<compile_context>
chip_gen: v7x
topology: tpu7x:2x2x1
jax: 0.10.0
libtpu: 0.0.40
codegen_flags: <defaults>
</compile_context>

<pallas_src>
import jax
import jax.numpy as jnp
from jax.experimental import pallas as pl
from jax.experimental.pallas import tpu as pltpu

LANE = 128     # vreg lane width
SUBLANE = 8    # vreg sublane count (f32)


def _round_up(n, m):
    return ((n + m - 1) // m) * m


def _make_mlp_kernel(bias_offsets, bias_sizes):
    """Build the fused-MLP kernel with static bias offsets into the concatenated bias row."""
    relu_after = (True, True, True, False, False, False)  # fc1 has ReLU after layers 1-3 only

    def kernel(x_ref, w1, w2, w3, w4, w5, w6, b_ref, o_ref):
        w_refs = (w1, w2, w3, w4, w5, w6)
        h = x_ref[...]  # bf16 activation tile (TB, F0), lane-dense
        for li, w_ref in enumerate(w_refs):
            off, sz = bias_offsets[li], bias_sizes[li]
            # MXU matmul: bf16 x bf16 -> f32 accumulator
            acc = jnp.dot(h, w_ref[...], preferred_element_type=jnp.float32)
            acc = acc + b_ref[:, off:off + sz]            # f32 bias add (row broadcast)
            if relu_after[li]:
                acc = jnp.maximum(acc, 0.0)               # f32 ReLU (v5e-friendly)
            if li < 5:
                h = acc.astype(jnp.bfloat16)              # bf16 feed to next matmul
            else:
                o_ref[...] = acc                          # final f32 tile, lane-dense store

    return kernel


def net_forward(x, params, *, batch_tile=128):
    """x: (B, cols) f32. params: list of 6 (W[in, out] f32, b[1, out] f32) pairs.

    Returns (B, classes) f32, matching the PyTorch Net forward pass.
    """
    batch, cols = x.shape
    classes = params[-1][0].shape[1]

    in_dims = [w.shape[0] for w, _ in params]
    out_dims = [w.shape[1] for w, _ in params]
    pin = [_round_up(d, LANE) for d in in_dims]    # padded contraction dims
    pout = [_round_up(d, LANE) for d in out_dims]  # padded output dims (lane-dense)

    # Batch tiling: pad batch to a multiple of the tile; tile itself is a
    # sublane multiple (>=128 recommended on real workloads).
    b_pad = _round_up(batch, SUBLANE)
    tb = min(batch_tile, b_pad)
    tb = _round_up(tb, SUBLANE)
    b_pad = _round_up(b_pad, tb)
    grid = (b_pad // tb,)

    # --- zero-pad + cast operands (wrapper-side layout plumbing) -------------
    x_p = jnp.pad(x, ((0, b_pad - batch), (0, pin[0] - cols))).astype(jnp.bfloat16)

    w_padded = []
    b_padded = []
    for (w, b), di, do in zip(params, pin, pout):
        w_padded.append(
            jnp.pad(w, ((0, di - w.shape[0]), (0, do - w.shape[1]))).astype(jnp.bfloat16))
        b_padded.append(jnp.pad(b, ((0, 0), (0, do - b.shape[1]))).astype(jnp.float32))

    # Concatenate all biases into one resident (1, sum(pout)) f32 row to cut
    # the operand count; segment offsets are 128-aligned by construction.
    bias_offsets = []
    off = 0
    for do in pout:
        bias_offsets.append(off)
        off += do
    total_bias = off
    b_cat = jnp.concatenate(b_padded, axis=1)

    kernel = _make_mlp_kernel(tuple(bias_offsets), tuple(pout))

    x_spec = pl.BlockSpec((tb, pin[0]), lambda i: (i, 0))
    w_specs = [pl.BlockSpec((pin[k], pout[k]), lambda i: (0, 0)) for k in range(6)]
    b_spec = pl.BlockSpec((1, total_bias), lambda i: (0, 0))
    o_spec = pl.BlockSpec((tb, pout[-1]), lambda i: (i, 0))

    out_padded = pl.pallas_call(
        kernel,
        out_shape=jax.ShapeDtypeStruct((b_pad, pout[-1]), jnp.float32),
        grid=grid,
        in_specs=[x_spec] + w_specs + [b_spec],
        out_specs=o_spec,
        compiler_params=pltpu.CompilerParams(
            dimension_semantics=("parallel",),  # v7x: split batch grid across both TCs
        ),
    )(x_p, *w_padded, b_cat)

    return out_padded[:batch, :classes]


def init_params(key, cols, size_hidden, classes):
    """nn.Linear-style uniform(-1/sqrt(fan_in), +1/sqrt(fan_in)) init.
    Weights stored pre-transposed as (in_features, out_features)."""
    dims = [
        (cols, size_hidden),
        (size_hidden, size_hidden),
        (size_hidden, size_hidden),
        (size_hidden, size_hidden * 2),
        (size_hidden * 2, size_hidden),
        (size_hidden, classes),
    ]
    params = []
    for fan_in, fan_out in dims:
        key, kw, kb = jax.random.split(key, 3)
        bound = 1.0 / (fan_in ** 0.5)
        w = jax.random.uniform(kw, (fan_in, fan_out), jnp.float32, -bound, bound)
        b = jax.random.uniform(kb, (1, fan_out), jnp.float32, -bound, bound)
        params.append((w, b))
    return params


def reference_forward(x, params, *, matmul_dtype=jnp.float32):
    """Plain-JAX reference of the same MLP. matmul_dtype=bfloat16 mimics the
    kernel's bf16-matmul / f32-accumulate numerics."""
    relu_after = [True, True, True, False, False, False]
    h = x
    for (w, b), act in zip(params, relu_after):
        h = jnp.dot(h.astype(matmul_dtype), w.astype(matmul_dtype),
                    preferred_element_type=jnp.float32) + b
        if act:
            h = jnp.maximum(h, 0.0)
    return h


if __name__ == "__main__":
    cols, size_hidden, classes = 16, 32, 4
    batch = 256  # small, but exercises a 2-step batch grid with TB=128

    key = jax.random.PRNGKey(0)
    key, kx = jax.random.split(key)
    x = jax.random.normal(kx, (batch, cols), dtype=jnp.float32)

    params = init_params(key, cols, size_hidden, classes)

    out = jax.block_until_ready(net_forward(x, params, batch_tile=128))
    assert out.shape == (batch, classes)

    # Strict check against a reference with matched bf16-matmul numerics.
    ref_bf16 = reference_forward(x, params, matmul_dtype=jnp.bfloat16)
    assert jnp.allclose(out, ref_bf16, atol=1e-2, rtol=1e-2), \
        float(jnp.max(jnp.abs(out - ref_bf16)))

    # Loose sanity check against the full-f32 math (semantics of the PyTorch Net).
    ref_f32 = reference_forward(x, params, matmul_dtype=jnp.float32)
    assert jnp.allclose(out, ref_f32, atol=1e-1, rtol=1e-1), \
        float(jnp.max(jnp.abs(out - ref_f32)))

    print("KERNEL_OK")
</pallas_src>

<mosaic_0001>
module attributes {stable_mosaic.version = 11 : i64} {
  func.func @kernel(%arg0: i32, %arg1: memref<128x128xbf16, #tpu.memory_space<vmem>>, %arg2: memref<128x128xbf16, #tpu.memory_space<vmem>>, %arg3: memref<128x128xbf16, #tpu.memory_space<vmem>>, %arg4: memref<128x128xbf16, #tpu.memory_space<vmem>>, %arg5: memref<128x128xbf16, #tpu.memory_space<vmem>>, %arg6: memref<128x128xbf16, #tpu.memory_space<vmem>>, %arg7: memref<128x128xbf16, #tpu.memory_space<vmem>>, %arg8: memref<1x768xf32, #tpu.memory_space<vmem>>, %arg9: memref<128x128xf32, #tpu.memory_space<vmem>>) attributes {dimension_semantics = [#tpu.dimension_semantics<parallel>], iteration_bounds = array<i64: 2>, scalar_prefetch = 0 : i64, scratch_operands = 0 : i64, tpu.core_type = #tpu.core_type<tc>, window_params = [{transform_indices = @transform_0, window_bounds = array<i64: 128, 128>}, {pipeline_mode = #tpu.pipeline_mode<synchronous>, transform_indices = @transform_1, window_bounds = array<i64: 128, 128>}, {pipeline_mode = #tpu.pipeline_mode<synchronous>, transform_indices = @transform_2, window_bounds = array<i64: 128, 128>}, {pipeline_mode = #tpu.pipeline_mode<synchronous>, transform_indices = @transform_3, window_bounds = array<i64: 128, 128>}, {pipeline_mode = #tpu.pipeline_mode<synchronous>, transform_indices = @transform_4, window_bounds = array<i64: 128, 128>}, {pipeline_mode = #tpu.pipeline_mode<synchronous>, transform_indices = @transform_5, window_bounds = array<i64: 128, 128>}, {pipeline_mode = #tpu.pipeline_mode<synchronous>, transform_indices = @transform_6, window_bounds = array<i64: 128, 128>}, {pipeline_mode = #tpu.pipeline_mode<synchronous>, transform_indices = @transform_7, window_bounds = array<i64: 1, 768>}, {transform_indices = @transform_8, window_bounds = array<i64: 128, 128>}]} {
    %c0 = arith.constant 0 : index
    %c0_0 = arith.constant 0 : index
    %0 = vector.load %arg1[%c0, %c0_0] : memref<128x128xbf16, #tpu.memory_space<vmem>>, vector<128x128xbf16>
    %c0_1 = arith.constant 0 : index
    %c0_2 = arith.constant 0 : index
    %1 = vector.load %arg2[%c0_1, %c0_2] : memref<128x128xbf16, #tpu.memory_space<vmem>>, vector<128x128xbf16>
    %cst = arith.constant dense<0.000000e+00> : vector<128x128xf32>
    %2 = tpu.matmul %0, %1, %cst {dimension_numbers = #tpu.dot_dimension_numbers<[1], [0], [0], [1], [0, 0, 1, 1], [], []>} : vector<128x128xbf16>, vector<128x128xbf16>, vector<128x128xf32> -> vector<128x128xf32>
    %c0_3 = arith.constant 0 : index
    %c0_4 = arith.constant 0 : index
    %3 = vector.load %arg8[%c0_3, %c0_4] : memref<1x768xf32, #tpu.memory_space<vmem>>, vector<1x128xf32>
    %4 = vector.broadcast %3 : vector<1x128xf32> to vector<128x128xf32>
    %5 = arith.addf %2, %4 : vector<128x128xf32>
    %cst_5 = arith.constant 0.000000e+00 : f32
    %6 = vector.broadcast %cst_5 : f32 to vector<128x128xf32>
    %7 = arith.maximumf %5, %6 : vector<128x128xf32>
    %8 = arith.truncf %7 : vector<128x128xf32> to vector<128x128xbf16>
    %c0_6 = arith.constant 0 : index
    %c0_7 = arith.constant 0 : index
    %9 = vector.load %arg3[%c0_6, %c0_7] : memref<128x128xbf16, #tpu.memory_space<vmem>>, vector<128x128xbf16>
    %cst_8 = arith.constant dense<0.000000e+00> : vector<128x128xf32>
    %10 = tpu.matmul %8, %9, %cst_8 {dimension_numbers = #tpu.dot_dimension_numbers<[1], [0], [0], [1], [0, 0, 1, 1], [], []>} : vector<128x128xbf16>, vector<128x128xbf16>, vector<128x128xf32> -> vector<128x128xf32>
    %c0_9 = arith.constant 0 : index
    %c128 = arith.constant 128 : index
    %11 = vector.load %arg8[%c0_9, %c128] : memref<1x768xf32, #tpu.memory_space<vmem>>, vector<1x128xf32>
    %12 = vector.broadcast %11 : vector<1x128xf32> to vector<128x128xf32>
    %13 = arith.addf %10, %12 : vector<128x128xf32>
    %cst_10 = arith.constant 0.000000e+00 : f32
    %14 = vector.broadcast %cst_10 : f32 to vector<128x128xf32>
    %15 = arith.maximumf %13, %14 : vector<128x128xf32>
    %16 = arith.truncf %15 : vector<128x128xf32> to vector<128x128xbf16>
    %c0_11 = arith.constant 0 : index
    %c0_12 = arith.constant 0 : index
    %17 = vector.load %arg4[%c0_11, %c0_12] : memref<128x128xbf16, #tpu.memory_space<vmem>>, vector<128x128xbf16>
    %cst_13 = arith.constant dense<0.000000e+00> : vector<128x128xf32>
    %18 = tpu.matmul %16, %17, %cst_13 {dimension_numbers = #tpu.dot_dimension_numbers<[1], [0], [0], [1], [0, 0, 1, 1], [], []>} : vector<128x128xbf16>, vector<128x128xbf16>, vector<128x128xf32> -> vector<128x128xf32>
    %c0_14 = arith.constant 0 : index
    %c256 = arith.constant 256 : index
    %19 = vector.load %arg8[%c0_14, %c256] : memref<1x768xf32, #tpu.memory_space<vmem>>, vector<1x128xf32>
    %20 = vector.broadcast %19 : vector<1x128xf32> to vector<128x128xf32>
    %21 = arith.addf %18, %20 : vector<128x128xf32>
    %cst_15 = arith.constant 0.000000e+00 : f32
    %22 = vector.broadcast %cst_15 : f32 to vector<128x128xf32>
    %23 = arith.maximumf %21, %22 : vector<128x128xf32>
    %24 = arith.truncf %23 : vector<128x128xf32> to vector<128x128xbf16>
    %c0_16 = arith.constant 0 : index
    %c0_17 = arith.constant 0 : index
    %25 = vector.load %arg5[%c0_16, %c0_17] : memref<128x128xbf16, #tpu.memory_space<vmem>>, vector<128x128xbf16>
    %cst_18 = arith.constant dense<0.000000e+00> : vector<128x128xf32>
    %26 = tpu.matmul %24, %25, %cst_18 {dimension_numbers = #tpu.dot_dimension_numbers<[1], [0], [0], [1], [0, 0, 1, 1], [], []>} : vector<128x128xbf16>, vector<128x128xbf16>, vector<128x128xf32> -> vector<128x128xf32>
    %c0_19 = arith.constant 0 : index
    %c384 = arith.constant 384 : index
    %27 = vector.load %arg8[%c0_19, %c384] : memref<1x768xf32, #tpu.memory_space<vmem>>, vector<1x128xf32>
    %28 = vector.broadcast %27 : vector<1x128xf32> to vector<128x128xf32>
    %29 = arith.addf %26, %28 : vector<128x128xf32>
    %30 = arith.truncf %29 : vector<128x128xf32> to vector<128x128xbf16>
    %c0_20 = arith.constant 0 : index
    %c0_21 = arith.constant 0 : index
    %31 = vector.load %arg6[%c0_20, %c0_21] : memref<128x128xbf16, #tpu.memory_space<vmem>>, vector<128x128xbf16>
    %cst_22 = arith.constant dense<0.000000e+00> : vector<128x128xf32>
    %32 = tpu.matmul %30, %31, %cst_22 {dimension_numbers = #tpu.dot_dimension_numbers<[1], [0], [0], [1], [0, 0, 1, 1], [], []>} : vector<128x128xbf16>, vector<128x128xbf16>, vector<128x128xf32> -> vector<128x128xf32>
    %c0_23 = arith.constant 0 : index
    %c512 = arith.constant 512 : index
    %33 = vector.load %arg8[%c0_23, %c512] : memref<1x768xf32, #tpu.memory_space<vmem>>, vector<1x128xf32>
    %34 = vector.broadcast %33 : vector<1x128xf32> to vector<128x128xf32>
    %35 = arith.addf %32, %34 : vector<128x128xf32>
    %36 = arith.truncf %35 : vector<128x128xf32> to vector<128x128xbf16>
    %c0_24 = arith.constant 0 : index
    %c0_25 = arith.constant 0 : index
    %37 = vector.load %arg7[%c0_24, %c0_25] : memref<128x128xbf16, #tpu.memory_space<vmem>>, vector<128x128xbf16>
    %cst_26 = arith.constant dense<0.000000e+00> : vector<128x128xf32>
    %38 = tpu.matmul %36, %37, %cst_26 {dimension_numbers = #tpu.dot_dimension_numbers<[1], [0], [0], [1], [0, 0, 1, 1], [], []>} : vector<128x128xbf16>, vector<128x128xbf16>, vector<128x128xf32> -> vector<128x128xf32>
    %c0_27 = arith.constant 0 : index
    %c640 = arith.constant 640 : index
    %39 = vector.load %arg8[%c0_27, %c640] : memref<1x768xf32, #tpu.memory_space<vmem>>, vector<1x128xf32>
    %40 = vector.broadcast %39 : vector<1x128xf32> to vector<128x128xf32>
    %41 = arith.addf %38, %40 : vector<128x128xf32>
    %c0_28 = arith.constant 0 : index
    %c0_29 = arith.constant 0 : index
    %42 = vector.load %arg9[%c0_28, %c0_29] : memref<128x128xf32, #tpu.memory_space<vmem>>, vector<128x128xf32>
    tpu.vector_store %arg9[%c0_28, %c0_29], %41 {strides = array<i32>} : memref<128x128xf32, #tpu.memory_space<vmem>>, vector<128x128xf32>,
    return
  }
  func.func @transform_0(%arg0: i32) -> (i32, i32) {
    %c0_i32 = arith.constant 0 : i32
    %c0_i32_0 = arith.constant 0 : i32
    return %arg0, %c0_i32 : i32, i32
  }
  func.func @transform_1(%arg0: i32) -> (i32, i32) {
    %c0_i32 = arith.constant 0 : i32
    %c0_i32_0 = arith.constant 0 : i32
    %c0_i32_1 = arith.constant 0 : i32
    return %c0_i32, %c0_i32_0 : i32, i32
  }
  func.func @transform_2(%arg0: i32) -> (i32, i32) {
    %c0_i32 = arith.constant 0 : i32
    %c0_i32_0 = arith.constant 0 : i32
    %c0_i32_1 = arith.constant 0 : i32
    return %c0_i32, %c0_i32_0 : i32, i32
  }
  func.func @transform_3(%arg0: i32) -> (i32, i32) {
    %c0_i32 = arith.constant 0 : i32
    %c0_i32_0 = arith.constant 0 : i32
    %c0_i32_1 = arith.constant 0 : i32
    return %c0_i32, %c0_i32_0 : i32, i32
  }
  func.func @transform_4(%arg0: i32) -> (i32, i32) {
    %c0_i32 = arith.constant 0 : i32
    %c0_i32_0 = arith.constant 0 : i32
    %c0_i32_1 = arith.constant 0 : i32
    return %c0_i32, %c0_i32_0 : i32, i32
  }
  func.func @transform_5(%arg0: i32) -> (i32, i32) {
    %c0_i32 = arith.constant 0 : i32
    %c0_i32_0 = arith.constant 0 : i32
    %c0_i32_1 = arith.constant 0 : i32
    return %c0_i32, %c0_i32_0 : i32, i32
  }
  func.func @transform_6(%arg0: i32) -> (i32, i32) {
    %c0_i32 = arith.constant 0 : i32
    %c0_i32_0 = arith.constant 0 : i32
    %c0_i32_1 = arith.constant 0 : i32
    return %c0_i32, %c0_i32_0 : i32, i32
  }
  func.func @transform_7(%arg0: i32) -> (i32, i32) {
    %c0_i32 = arith.constant 0 : i32
    %c0_i32_0 = arith.constant 0 : i32
    %c0_i32_1 = arith.constant 0 : i32
    return %c0_i32, %c0_i32_0 : i32, i32
  }
  func.func @transform_8(%arg0: i32) -> (i32, i32) {
    %c0_i32 = arith.constant 0 : i32
    %c0_i32_0 = arith.constant 0 : i32
    return %arg0, %c0_i32 : i32, i32
  }
}

</mosaic_0001>

<llo_original>
// kernel: tpu_custom_call.1
$region0: #{tpu_custom_call.1}
  #allocation0 [shape = 'u32[]', space=smem, size = 0x4, offset = 0x4, fixed_abs, tag = 'smem constant byte address 0x4 - core index']
  #allocation1 [shape = 'u32[144,128]{1,0:T(1,128)}', space=vmem, size = 0x12000, scoped, tag = 'internal scratch']
  %s0 = inlined_call_operand.hbm [shape: bf16[256,128], index: 0, kind: input, shape index: {}]
  %s1 = inlined_call_operand.hbm [shape: bf16[128,128], index: 1, kind: input, shape index: {}]
  %s2 = inlined_call_operand.hbm [shape: bf16[128,128], index: 2, kind: input, shape index: {}]
  %s3 = inlined_call_operand.hbm [shape: bf16[128,128], index: 3, kind: input, shape index: {}]
  %s4 = inlined_call_operand.hbm [shape: bf16[128,128], index: 4, kind: input, shape index: {}]
  %s5 = inlined_call_operand.hbm [shape: bf16[128,128], index: 5, kind: input, shape index: {}]
  %s6 = inlined_call_operand.hbm [shape: bf16[128,128], index: 6, kind: input, shape index: {}]
  %s7 = inlined_call_operand.vmem [shape: f32[1,768], index: 7, kind: input, shape index: {}]
  %s8 = inlined_call_operand.hbm [shape: f32[256,128], index: 8, kind: output, shape index: {}]
  %s9 = sld [smem:[#allocation0]]
  $region93: #{tpu_custom_call.1} parent=0
    _
  %s11 = ssub.s32 1, %s9
  %s12 = scalar_select 0, %s11, %s9
  $region1: #{tpu_custom_call.1} parent=0
    #allocation2 [shape = 'u8[65536]{0}', space=vmem, size = 0x10000, scoped, tag = 'input window, operand 0']
    #allocation3 [shape = 's32[2]{0}', space=sflag, size = 0x8, scoped, tag = 'scoped memory for tpu_custom_call.1']
    #allocation4 [shape = 's32[2]{0}', space=sflag, size = 0x8, scoped, tag = 'scoped memory for tpu_custom_call.1']
    #allocation5 [shape = 'u8[32768]{0}', space=vmem, size = 0x8000, scoped, tag = 'input window, operand 1, single buffered']
    #allocation6 [shape = 's32[1]{0}', space=sflag, size = 0x4, scoped, tag = 'scoped memory for tpu_custom_call.1']
    #allocation7 [shape = 'u8[32768]{0}', space=vmem, size = 0x8000, scoped, tag = 'input window, operand 2, single buffered']
    #allocation8 [shape = 'u8[32768]{0}', space=vmem, size = 0x8000, scoped, tag = 'input window, operand 3, single buffered']
    #allocation9 [shape = 's32[1]{0}', space=sflag, size = 0x4, scoped, tag = 'scoped memory for tpu_custom_call.1']
    #allocation10 [shape = 'u8[32768]{0}', space=vmem, size = 0x8000, scoped, tag = 'input window, operand 4, single buffered']
    #allocation11 [shape = 'u8[32768]{0}', space=vmem, size = 0x8000, scoped, tag = 'input window, operand 5, single buffered']
    #allocation12 [shape = 's32[1]{0}', space=sflag, size = 0x4, scoped, tag = 'scoped memory for tpu_custom_call.1']
    #allocation13 [shape = 'u8[32768]{0}', space=vmem, size = 0x8000, scoped, tag = 'input window, operand 6, single buffered']
    #allocation14 [shape = 'u8[131072]{0}', space=vmem, size = 0x20000, scoped, tag = 'output window, operand 0']
    %13 = vsyncpa [#allocation3], 0
    %s14 = scalar_lea.sflag [#allocation3], 1
    %15 = vsyncpa %s14, 0
    %16 = vsyncpa [#allocation6], 0
    %17 = vsyncpa [#allocation9], 0
    %18 = vsyncpa [#allocation12], 0
    %19 = vsyncpa [#allocation4], 0
    %s20 = scalar_lea.sflag [#allocation4], 1
    %21 = vsyncpa %s20, 0
    loop: start=0, step=1, limit=4
    $region2: #{tpu_custom_call.1} parent=1 // loop_pre_header
      _
    $region3: #{tpu_custom_call.1} parent=1 // loop_header
      %s23 = sphi 0, %s27
      %p24 = scmp.ge.s32.totalorder %s23, 4
      %s33 = sphi 0, %s35
      %s36 = sphi 0, %s33
      %s37 = sphi 0, %s36
      %s53 = sphi 0, %s37
      %s57 = sphi 0, %s57
      %s59 = sphi 0, %s57
      %s60 = sphi 0, %s59
      %s74 = sphi 0, %s60
      %s78 = sphi 0, %s78
      %s80 = sphi 0, %s78
      %s81 = sphi 0, %s80
      %s95 = sphi 0, %s81
      %s99 = sphi 0, %s99
      %s101 = sphi 0, %s99
      %s102 = sphi 0, %s101
      %s116 = sphi 0, %s102
      %s120 = sphi 0, %s120
      %s122 = sphi 0, %s120
      %s123 = sphi 0, %s122
      %s137 = sphi 0, %s123
      %s141 = sphi 0, %s141
      %s143 = sphi 0, %s141
      %s144 = sphi 0, %s143
      %s158 = sphi 0, %s144
      %s162 = sphi 0, %s162
      %s164 = sphi 0, %s162
      %s165 = sphi 0, %s164
      %s179 = sphi 0, %s165
      %s183 = sphi 0, %s183
      %s185 = sphi 0, %s183
      %s186 = sphi 0, %s185
      %s200 = sphi 0, %s186
      %s206 = sphi 0, %s208
      %s209 = sphi 0, %s206
      %s210 = sphi 0, %s209
      %s226 = sphi 0, %s210
    $region4: #{tpu_custom_call.1} parent=1 // loop_header_branch
      %26 = sbr.rel (%p24) target = $region8
    $region5: #{tpu_custom_call.1} parent=1 // loop_body
      %s28 = ssub.s32 %s23, 1
      %s29 = ssub.s32 %s23, 2
      %s30 = sadd.s32 %s23, 1
      %s31 = ssub.s32 %s23, %s30
      %p32 = scmp.eq.s32.totalorder %s31, 0
      %s34 = sadd.s32 %s33, 1
      %s35 = scalar_select %p32, %s33, %s34
      %p38 = pneg %p32
      %p39 = scmp.eq.s32.totalorder %s23, 1
      %p40 = por %p38, %p39
      %p41 = scmp.ne.s32.totalorder %s33, %s36
      %p42 = scmp.eq.s32.totalorder %s23, 0
      %p43 = por %p41, %p42
      %p44 = scmp.ne.s32.totalorder %s33, %s36
      %p45 = scmp.eq.s32.totalorder %s28, 1
      %p46 = por %p44, %p45
      %p47 = scmp.ne.s32.totalorder %s36, %s37
      %p48 = scmp.eq.s32.totalorder %s28, 0
      %p49 = por %p47, %p48
      %p50 = scmp.ne.s32.totalorder %s36, %s37
      %p51 = scmp.eq.s32.totalorder %s29, 1
      %p52 = por %p50, %p51
      %p54 = scmp.ne.s32.totalorder %s37, %s53
      %p55 = scmp.eq.s32.totalorder %s29, 0
      %p56 = por %p54, %p55
      %s58 = sadd.s32 %s57, 1
      %p61 = scmp.eq.s32.totalorder %s23, 1
      %p62 = scmp.ne.s32.totalorder %s57, %s59
      %p63 = scmp.eq.s32.totalorder %s23, 0
      %p64 = por %p62, %p63
      %p65 = scmp.ne.s32.totalorder %s57, %s59
      %p66 = scmp.eq.s32.totalorder %s28, 1
      %p67 = por %p65, %p66
      %p68 = scmp.ne.s32.totalorder %s59, %s60
      %p69 = scmp.eq.s32.totalorder %s28, 0
      %p70 = por %p68, %p69
      %p71 = scmp.ne.s32.totalorder %s59, %s60
      %p72 = scmp.eq.s32.totalorder %s29, 1
      %p73 = por %p71, %p72
      %p75 = scmp.ne.s32.totalorder %s60, %s74
      %p76 = scmp.eq.s32.totalorder %s29, 0
      %p77 = por %p75, %p76
      %s79 = sadd.s32 %s78, 1
      %p82 = scmp.eq.s32.totalorder %s23, 1
      %p83 = scmp.ne.s32.totalorder %s78, %s80
      %p84 = scmp.eq.s32.totalorder %s23, 0
      %p85 = por %p83, %p84
      %p86 = scmp.ne.s32.totalorder %s78, %s80
      %p87 = scmp.eq.s32.totalorder %s28, 1
      %p88 = por %p86, %p87
      %p89 = scmp.ne.s32.totalorder %s80, %s81
      %p90 = scmp.eq.s32.totalorder %s28, 0
      %p91 = por %p89, %p90
      %p92 = scmp.ne.s32.totalorder %s80, %s81
      %p93 = scmp.eq.s32.totalorder %s29, 1
      %p94 = por %p92, %p93
      %p96 = scmp.ne.s32.totalorder %s81, %s95
      %p97 = scmp.eq.s32.totalorder %s29, 0
      %p98 = por %p96, %p97
      %s100 = sadd.s32 %s99, 1
      %p103 = scmp.eq.s32.totalorder %s23, 1
      %p104 = scmp.ne.s32.totalorder %s99, %s101
      %p105 = scmp.eq.s32.totalorder %s23, 0
      %p106 = por %p104, %p105
      %p107 = scmp.ne.s32.totalorder %s99, %s101
      %p108 = scmp.eq.s32.totalorder %s28, 1
      %p109 = por %p107, %p108
      %p110 = scmp.ne.s32.totalorder %s101, %s102
      %p111 = scmp.eq.s32.totalorder %s28, 0
      %p112 = por %p110, %p111
      %p113 = scmp.ne.s32.totalorder %s101, %s102
      %p114 = scmp.eq.s32.totalorder %s29, 1
      %p115 = por %p113, %p114
      %p117 = scmp.ne.s32.totalorder %s102, %s116
      %p118 = scmp.eq.s32.totalorder %s29, 0
      %p119 = por %p117, %p118
      %s121 = sadd.s32 %s120, 1
      %p124 = scmp.eq.s32.totalorder %s23, 1
      %p125 = scmp.ne.s32.totalorder %s120, %s122
      %p126 = scmp.eq.s32.totalorder %s23, 0
      %p127 = por %p125, %p126
      %p128 = scmp.ne.s32.totalorder %s120, %s122
      %p129 = scmp.eq.s32.totalorder %s28, 1
      %p130 = por %p128, %p129
      %p131 = scmp.ne.s32.totalorder %s122, %s123
      %p132 = scmp.eq.s32.totalorder %s28, 0
      %p133 = por %p131, %p132
      %p134 = scmp.ne.s32.totalorder %s122, %s123
      %p135 = scmp.eq.s32.totalorder %s29, 1
      %p136 = por %p134, %p135
      %p138 = scmp.ne.s32.totalorder %s123, %s137
      %p139 = scmp.eq.s32.totalorder %s29, 0
      %p140 = por %p138, %p139
      %s142 = sadd.s32 %s141, 1
      %p145 = scmp.eq.s32.totalorder %s23, 1
      %p146 = scmp.ne.s32.totalorder %s141, %s143
      %p147 = scmp.eq.s32.totalorder %s23, 0
      %p148 = por %p146, %p147
      %p149 = scmp.ne.s32.totalorder %s141, %s143
      %p150 = scmp.eq.s32.totalorder %s28, 1
      %p151 = por %p149, %p150
      %p152 = scmp.ne.s32.totalorder %s143, %s144
      %p153 = scmp.eq.s32.totalorder %s28, 0
      %p154 = por %p152, %p153
      %p155 = scmp.ne.s32.totalorder %s143, %s144
      %p156 = scmp.eq.s32.totalorder %s29, 1
      %p157 = por %p155, %p156
      %p159 = scmp.ne.s32.totalorder %s144, %s158
      %p160 = scmp.eq.s32.totalorder %s29, 0
      %p161 = por %p159, %p160
      %s163 = sadd.s32 %s162, 1
      %p166 = scmp.eq.s32.totalorder %s23, 1
      %p167 = scmp.ne.s32.totalorder %s162, %s164
      %p168 = scmp.eq.s32.totalorder %s23, 0
      %p169 = por %p167, %p168
      %p170 = scmp.ne.s32.totalorder %s162, %s164
      %p171 = scmp.eq.s32.totalorder %s28, 1
      %p172 = por %p170, %p171
      %p173 = scmp.ne.s32.totalorder %s164, %s165
      %p174 = scmp.eq.s32.totalorder %s28, 0
      %p175 = por %p173, %p174
      %p176 = scmp.ne.s32.totalorder %s164, %s165
      %p177 = scmp.eq.s32.totalorder %s29, 1
      %p178 = por %p176, %p177
      %p180 = scmp.ne.s32.totalorder %s165, %s179
      %p181 = scmp.eq.s32.totalorder %s29, 0
      %p182 = por %p180, %p181
      %s184 = sadd.s32 %s183, 1
      %p187 = scmp.eq.s32.totalorder %s23, 1
      %p188 = scmp.ne.s32.totalorder %s183, %s185
      %p189 = scmp.eq.s32.totalorder %s23, 0
      %p190 = por %p188, %p189
      %p191 = scmp.ne.s32.totalorder %s183, %s185
      %p192 = scmp.eq.s32.totalorder %s28, 1
      %p193 = por %p191, %p192
      %p194 = scmp.ne.s32.totalorder %s185, %s186
      %p195 = scmp.eq.s32.totalorder %s28, 0
      %p196 = por %p194, %p195
      %p197 = scmp.ne.s32.totalorder %s185, %s186
      %p198 = scmp.eq.s32.totalorder %s29, 1
      %p199 = por %p197, %p198
      %p201 = scmp.ne.s32.totalorder %s186, %s200
      %p202 = scmp.eq.s32.totalorder %s29, 0
      %p203 = por %p201, %p202
      %s204 = ssub.s32 %s23, %s30
      %p205 = scmp.eq.s32.totalorder %s204, 0
      %s207 = sadd.s32 %s206, 1
      %s208 = scalar_select %p205, %s206, %s207
      %p211 = pneg %p205
      %p212 = scmp.eq.s32.totalorder %s23, 1
      %p213 = por %p211, %p212
      %p214 = scmp.ne.s32.totalorder %s206, %s209
      %p215 = scmp.eq.s32.totalorder %s23, 0
      %p216 = por %p214, %p215
      %p217 = scmp.ne.s32.totalorder %s206, %s209
      %p218 = scmp.eq.s32.totalorder %s28, 1
      %p219 = por %p217, %p218
      %p220 = scmp.ne.s32.totalorder %s209, %s210
      %p221 = scmp.eq.s32.totalorder %s28, 0
      %p222 = por %p220, %p221
      %p223 = scmp.ne.s32.totalorder %s209, %s210
      %p224 = scmp.eq.s32.totalorder %s29, 1
      %p225 = por %p223, %p224
      %p227 = scmp.ne.s32.totalorder %s210, %s226
      %p228 = scmp.eq.s32.totalorder %s29, 0
      %p229 = por %p227, %p228
      %p230 = scmp.le.s32.totalorder 1, %s23
      %p231 = scmp.lt.s32.totalorder %s23, 3
      %p232 = pnand %p230, %p231
      %p233 = pneg %p232
      // Predicated region
      $region9: #{tpu_custom_call.1} parent=5 // pred_check
        _
      $region10: #{tpu_custom_call.1} parent=5 // pred_check_branch
        %235 = sbr.rel (%p232) target = $region12
      $region11: #{tpu_custom_call.1} parent=5 // pred_region
        %s236 = ssub.s32 %s23, 1
        // Predicated region
        $region13: #{tpu_custom_call.1} parent=11 // pred_check
          %p237 = pneg %p70
        $region14: #{tpu_custom_call.1} parent=11 // pred_check_branch
          %239 = sbr.rel (%p237) target = $region16
        $region15: #{tpu_custom_call.1} parent=11 // pred_region
          %s241 = ssub.s32 1024, 1024
          %242 = vsyncadd [#allocation6], %s241
          %s243 = sshll.u32 [#allocation5], 4
          %s244 = int_to_ptr.vmem [resolvable:$true] %s243
          %249 = dma.hbm_to_vmem [thread:$0]  %s1, 1024, %s244, [#allocation6], 64, 64, 4
        $region16: #{tpu_custom_call.1} parent=11 // pred_fallthru
          _
        // Predicated region
        $region17: #{tpu_custom_call.1} parent=11 // pred_check
          %p250 = pneg %p91
        $region18: #{tpu_custom_call.1} parent=11 // pred_check_branch
          %252 = sbr.rel (%p250) target = $region20
        $region19: #{tpu_custom_call.1} parent=11 // pred_region
          %s254 = ssub.s32 1024, 1024
          %255 = vsyncadd [#allocation6], %s254
          %s256 = sshll.u32 [#allocation7], 4
          %s257 = int_to_ptr.vmem [resolvable:$true] %s256
          %262 = dma.hbm_to_vmem [thread:$0]  %s2, 1024, %s257, [#allocation6], 64, 64, 4
        $region20: #{tpu_custom_call.1} parent=11 // pred_fallthru
          _
        // Predicated region
        $region21: #{tpu_custom_call.1} parent=11 // pred_check
          %p263 = pneg %p112
        $region22: #{tpu_custom_call.1} parent=11 // pred_check_branch
          %265 = sbr.rel (%p263) target = $region24
        $region23: #{tpu_custom_call.1} parent=11 // pred_region
          %s267 = ssub.s32 1024, 1024
          %268 = vsyncadd [#allocation9], %s267
          %s269 = sshll.u32 [#allocation8], 4
          %s270 = int_to_ptr.vmem [resolvable:$true] %s269
          %275 = dma.hbm_to_vmem [thread:$0]  %s3, 1024, %s270, [#allocation9], 64, 64, 4
        $region24: #{tpu_custom_call.1} parent=11 // pred_fallthru
          _
        // Predicated region
        $region25: #{tpu_custom_call.1} parent=11 // pred_check
          %p276 = pneg %p133
        $region26: #{tpu_custom_call.1} parent=11 // pred_check_branch
          %278 = sbr.rel (%p276) target = $region28
        $region27: #{tpu_custom_call.1} parent=11 // pred_region
          %s280 = ssub.s32 1024, 1024
          %281 = vsyncadd [#allocation9], %s280
          %s282 = sshll.u32 [#allocation10], 4
          %s283 = int_to_ptr.vmem [resolvable:$true] %s282
          %288 = dma.hbm_to_vmem [thread:$0]  %s4, 1024, %s283, [#allocation9], 64, 64, 4
        $region28: #{tpu_custom_call.1} parent=11 // pred_fallthru
          _
        // Predicated region
        $region29: #{tpu_custom_call.1} parent=11 // pred_check
          %p289 = pneg %p154
        $region30: #{tpu_custom_call.1} parent=11 // pred_check_branch
          %291 = sbr.rel (%p289) target = $region32
        $region31: #{tpu_custom_call.1} parent=11 // pred_region
          %s293 = ssub.s32 1024, 1024
          %294 = vsyncadd [#allocation12], %s293
          %s295 = sshll.u32 [#allocation11], 4
          %s296 = int_to_ptr.vmem [resolvable:$true] %s295
          %301 = dma.hbm_to_vmem [thread:$0]  %s5, 1024, %s296, [#allocation12], 64, 64, 4
        $region32: #{tpu_custom_call.1} parent=11 // pred_fallthru
          _
        // Predicated region
        $region33: #{tpu_custom_call.1} parent=11 // pred_check
          %p302 = pneg %p175
        $region34: #{tpu_custom_call.1} parent=11 // pred_check_branch
          %304 = sbr.rel (%p302) target = $region36
        $region35: #{tpu_custom_call.1} parent=11 // pred_region
          %s306 = ssub.s32 1024, 1024
          %307 = vsyncadd [#allocation12], %s306
          %s308 = sshll.u32 [#allocation13], 4
          %s309 = int_to_ptr.vmem [resolvable:$true] %s308
          %314 = dma.hbm_to_vmem [thread:$0]  %s6, 1024, %s309, [#allocation12], 64, 64, 4
        $region36: #{tpu_custom_call.1} parent=11 // pred_fallthru
          _
        // Predicated region
        $region37: #{tpu_custom_call.1} parent=11 // pred_check
          %p315 = pneg %p196
        $region38: #{tpu_custom_call.1} parent=11 // pred_check_branch
          %317 = sbr.rel (%p315) target = $region40
        $region39: #{tpu_custom_call.1} parent=11 // pred_region
          _
        $region40: #{tpu_custom_call.1} parent=11 // pred_fallthru
          _
      $region12: #{tpu_custom_call.1} parent=5 // pred_fallthru
        _
      %p318 = scmp.lt.s32.totalorder %s23, 2
      // Predicated region
      $region41: #{tpu_custom_call.1} parent=5 // pred_check
        %p319 = pneg %p318
      $region42: #{tpu_custom_call.1} parent=5 // pred_check_branch
        %321 = sbr.rel (%p319) target = $region44
      $region43: #{tpu_custom_call.1} parent=5 // pred_region
        // Predicated region
        $region45: #{tpu_custom_call.1} parent=43 // pred_check
          %p322 = pneg %p43
        $region46: #{tpu_custom_call.1} parent=43 // pred_check_branch
          %324 = sbr.rel (%p322) target = $region48
        $region47: #{tpu_custom_call.1} parent=43 // pred_region
          %s325 = sand.u32 %s33, 1
          %s326 = scalar_lea.sflag [#allocation3], %s325
          %s327 = sand.u32 %s33, 1
          %s328 = smul.addr %s327, 64
          %s329 = scalar_lea.vmem [#allocation2], %s328
          %s330 = smul.u32 16, %s23
          %s332 = ssub.s32 1024, 1024
          %333 = vsyncadd %s326, %s332
          %s334 = smul.addr %s330, 64
          %s335 = scalar_lea.hbm %s0, %s334
          %s336 = sshll.u32 %s329, 4
          %s337 = int_to_ptr.vmem [resolvable:$true] %s336
          %342 = dma.hbm_to_vmem [thread:$0]  %s335, 1024, %s337, %s326, 64, 64, 4
        $region48: #{tpu_custom_call.1} parent=43 // pred_fallthru
          _
      $region44: #{tpu_custom_call.1} parent=5 // pred_fallthru
        _
      %p343 = scmp.le.s32.totalorder 1, %s23
      %p344 = scmp.lt.s32.totalorder %s23, 3
      %p345 = pnand %p343, %p344
      %p346 = pneg %p345
      // Predicated region
      $region49: #{tpu_custom_call.1} parent=5 // pred_check
        _
      $region50: #{tpu_custom_call.1} parent=5 // pred_check_branch
        %348 = sbr.rel (%p345) target = $region52
      $region51: #{tpu_custom_call.1} parent=5 // pred_region
        %s349 = ssub.s32 %s23, 1
        %s350 = sand.u32 %s36, 1
        %s351 = scalar_lea.sflag [#allocation3], %s350
        %s352 = sand.u32 %s36, 1
        %s353 = smul.addr %s352, 64
        %s354 = scalar_lea.vmem [#allocation2], %s353
        // Predicated region
        $region53: #{tpu_custom_call.1} parent=51 // pred_check
          %p355 = pneg %p49
        $region54: #{tpu_custom_call.1} parent=51 // pred_check_branch
          %357 = sbr.rel (%p355) target = $region56
        $region55: #{tpu_custom_call.1} parent=51 // pred_region
          %358 = dma.done %s351, 1024
        $region56: #{tpu_custom_call.1} parent=51 // pred_fallthru
          _
        // Predicated region
        $region57: #{tpu_custom_call.1} parent=51 // pred_check
          %p359 = pneg %p70
        $region58: #{tpu_custom_call.1} parent=51 // pred_check_branch
          %361 = sbr.rel (%p359) target = $region60
        $region59: #{tpu_custom_call.1} parent=51 // pred_region
          %362 = dma.done [#allocation6], 1024
        $region60: #{tpu_custom_call.1} parent=51 // pred_fallthru
          _
        // Predicated region
        $region61: #{tpu_custom_call.1} parent=51 // pred_check
          %p363 = pneg %p91
        $region62: #{tpu_custom_call.1} parent=51 // pred_check_branch
          %365 = sbr.rel (%p363) target = $region64
        $region63: #{tpu_custom_call.1} parent=51 // pred_region
          %366 = dma.done [#allocation6], 1024
        $region64: #{tpu_custom_call.1} parent=51 // pred_fallthru
          _
        // Predicated region
        $region65: #{tpu_custom_call.1} parent=51 // pred_check
          %p367 = pneg %p112
        $region66: #{tpu_custom_call.1} parent=51 // pred_check_branch
          %369 = sbr.rel (%p367) target = $region68
        $region67: #{tpu_custom_call.1} parent=51 // pred_region
          %370 = dma.done [#allocation9], 1024
        $region68: #{tpu_custom_call.1} parent=51 // pred_fallthru
          _
        // Predicated region
        $region69: #{tpu_custom_call.1} parent=51 // pred_check
          %p371 = pneg %p133
        $region70: #{tpu_custom_call.1} parent=51 // pred_check_branch
          %373 = sbr.rel (%p371) target = $region72
        $region71: #{tpu_custom_call.1} parent=51 // pred_region
          %374 = dma.done [#allocation9], 1024
        $region72: #{tpu_custom_call.1} parent=51 // pred_fallthru
          _
        // Predicated region
        $region73: #{tpu_custom_call.1} parent=51 // pred_check
          %p375 = pneg %p154
        $region74: #{tpu_custom_call.1} parent=51 // pred_check_branch
          %377 = sbr.rel (%p375) target = $region76
        $region75: #{tpu_custom_call.1} parent=51 // pred_region
          %378 = dma.done [#allocation12], 1024
        $region76: #{tpu_custom_call.1} parent=51 // pred_fallthru
          _
        // Predicated region
        $region77: #{tpu_custom_call.1} parent=51 // pred_check
          %p379 = pneg %p175
        $region78: #{tpu_custom_call.1} parent=51 // pred_check_branch
          %381 = sbr.rel (%p379) target = $region80
        $region79: #{tpu_custom_call.1} parent=51 // pred_region
          %382 = dma.done [#allocation12], 1024
        $region80: #{tpu_custom_call.1} parent=51 // pred_fallthru
          _
        %s383 = sand.u32 %s36, 1
        %s384 = scalar_lea.sflag [#allocation3], %s383
        %s385 = sand.u32 %s36, 1
        %s386 = smul.addr %s385, 64
        %s387 = scalar_lea.vmem [#allocation2], %s386
        %p388 = pneg %p49
        %p389 = pneg %p46
        %p390 = pneg %p70
        %p391 = pneg %p67
        %p392 = pneg %p91
        %p393 = pneg %p88
        %p394 = pneg %p112
        %p395 = pneg %p109
        %p396 = pneg %p133
        %p397 = pneg %p130
        %p398 = pneg %p154
        %p399 = pneg %p151
        %p400 = pneg %p175
        %p401 = pneg %p172
        %p402 = pneg %p196
        %p403 = pneg %p193
        %p404 = pneg %p222
        %p405 = pneg %p219
        %s406 = sand.u32 %s209, 1
        %s407 = scalar_lea.sflag [#allocation4], %s406
        %s408 = sand.u32 %s209, 1
        %s409 = smul.addr %s408, 128
        %s410 = scalar_lea.vmem [#allocation14], %s409
        %s411 = smul.u32 16, %s28
        %s412 = smul.u32 16, %s28
        %v414 = vld [vmem:[%s354] sm:$0xf]
        %v415 = vld [vmem:[%s354 + $0x4] sm:$0xf]
        %v416 = vld [vmem:[%s354 + $0x8] sm:$0xf]
        %v417 = vld [vmem:[%s354 + $0xc] sm:$0xf]
        %v418 = vld [vmem:[%s354 + $0x10] sm:$0xf]
        %v419 = vld [vmem:[%s354 + $0x14] sm:$0xf]
        %v420 = vld [vmem:[%s354 + $0x18] sm:$0xf]
        %v421 = vld [vmem:[%s354 + $0x1c] sm:$0xf]
        %v422 = vld [vmem:[%s354 + $0x20] sm:$0xf]
        %v423 = vld [vmem:[%s354 + $0x24] sm:$0xf]
        %v424 = vld [vmem:[%s354 + $0x28] sm:$0xf]
        %v425 = vld [vmem:[%s354 + $0x2c] sm:$0xf]
        %v426 = vld [vmem:[%s354 + $0x30] sm:$0xf]
        %v427 = vld [vmem:[%s354 + $0x34] sm:$0xf]
        %v428 = vld [vmem:[%s354 + $0x38] sm:$0xf]
        %v429 = vld [vmem:[%s354 + $0x3c] sm:$0xf]
        %v430 = vld [vmem:[#allocation5] sm:$0xf]
        %v431 = vld [vmem:[#allocation5 + $0x4] sm:$0xf]
        %v432 = vld [vmem:[#allocation5 + $0x8] sm:$0xf]
        %v433 = vld [vmem:[#allocation5 + $0xc] sm:$0xf]
        %v434 = vld [vmem:[#allocation5 + $0x10] sm:$0xf]
        %v435 = vld [vmem:[#allocation5 + $0x14] sm:$0xf]
        %v436 = vld [vmem:[#allocation5 + $0x18] sm:$0xf]
        %v437 = vld [vmem:[#allocation5 + $0x1c] sm:$0xf]
        %v438 = vld [vmem:[#allocation5 + $0x20] sm:$0xf]
        %v439 = vld [vmem:[#allocation5 + $0x24] sm:$0xf]
        %v440 = vld [vmem:[#allocation5 + $0x28] sm:$0xf]
        %v441 = vld [vmem:[#allocation5 + $0x2c] sm:$0xf]
        %v442 = vld [vmem:[#allocation5 + $0x30] sm:$0xf]
        %v443 = vld [vmem:[#allocation5 + $0x34] sm:$0xf]
        %v444 = vld [vmem:[#allocation5 + $0x38] sm:$0xf]
        %v445 = vld [vmem:[#allocation5 + $0x3c] sm:$0xf]
        %v446 = vld [vmem:[%s7] sm:$0x1]
        %v448 = vlaneseq
        %v449 = vshrl.u32 %v448, 7
        %v450 = vsub.s32 0, %v449
        %v451 = vrot.slane %v446, %v450
        %v469 = vunpack.c.l.b16 %v414
        %v470 = vunpack.c.l.b16 %v415
        %v471 = vunpack.c.l.b16 %v416
        %v472 = vunpack.c.l.b16 %v417
        %v473 = vunpack.c.l.b16 %v418
        %v474 = vunpack.c.l.b16 %v419
        %v475 = vunpack.c.l.b16 %v420
        %v476 = vunpack.c.l.b16 %v421
        %v477 = vunpack.c.l.b16 %v422
        %v478 = vunpack.c.l.b16 %v423
        %v479 = vunpack.c.l.b16 %v424
        %v480 = vunpack.c.l.b16 %v425
        %v481 = vunpack.c.l.b16 %v426
        %v482 = vunpack.c.l.b16 %v427
        %v483 = vunpack.c.l.b16 %v428
        %v484 = vunpack.c.l.b16 %v429
        %v485 = vpack.c.b16 %v470, %v469
        %v486 = vpack.c.b16 %v472, %v471
        %v487 = vpack.c.b16 %v474, %v473
        %v488 = vpack.c.b16 %v476, %v475
        %v489 = vpack.c.b16 %v478, %v477
        %v490 = vpack.c.b16 %v480, %v479
        %v491 = vpack.c.b16 %v482, %v481
        %v492 = vpack.c.b16 %v484, %v483
        %v517 = vunpack.c.l.b16 %v430
        %v518 = vunpack.c.l.b16 %v431
        %v519 = vunpack.c.l.b16 %v432
        %v520 = vunpack.c.l.b16 %v433
        %v521 = vunpack.c.l.b16 %v434
        %v522 = vunpack.c.l.b16 %v435
        %v523 = vunpack.c.l.b16 %v436
        %v524 = vunpack.c.l.b16 %v437
        %v525 = vunpack.c.l.b16 %v438
        %v526 = vunpack.c.l.b16 %v439
        %v527 = vunpack.c.l.b16 %v440
        %v528 = vunpack.c.l.b16 %v441
        %v529 = vunpack.c.l.b16 %v442
        %v530 = vunpack.c.l.b16 %v443
        %v531 = vunpack.c.l.b16 %v444
        %v532 = vunpack.c.l.b16 %v445
        %v533 = vpack.c.b16 %v518, %v517
        %v534 = vpack.c.b16 %v520, %v519
        %v535 = vpack.c.b16 %v522, %v521
        %v536 = vpack.c.b16 %v524, %v523
        %v537 = vpack.c.b16 %v526, %v525
        %v538 = vpack.c.b16 %v528, %v527
        %v539 = vpack.c.b16 %v530, %v529
        %v540 = vpack.c.b16 %v532, %v531
        %549 = vmatprep.subr.bf16.mxu0 0
        %550 = vmatpush1.bf16.msra.mxu0 %v533
        %551 = vmatprep.subr.bf16.mxu0 0
        %552 = vmatpush1.bf16.msra.mxu0 %v534
        %553 = vmatprep.subr.bf16.mxu0 0
        %554 = vmatpush1.bf16.msra.mxu0 %v535
        %555 = vmatprep.subr.bf16.mxu0 0
        %556 = vmatpush1.bf16.msra.mxu0 %v536
        %557 = vmatprep.subr.bf16.mxu0 0
        %558 = vmatpush1.bf16.msra.mxu0 %v537
        %559 = vmatprep.subr.bf16.mxu0 0
        %560 = vmatpush1.bf16.msra.mxu0 %v538
        %561 = vmatprep.subr.bf16.mxu0 0
        %562 = vmatpush1.bf16.msra.mxu0 %v539
        %563 = vmatprep.subr.bf16.mxu0 0
        %564 = vmatpush1.bf16.msra.mxu0 %v540
        %565 = vmatprep.subr.bf16.mxu0 0
        %566 = vmatpush1.bf16.msra.mxu0 0
        %567 = vmatprep.subr.bf16.mxu0 0
        %568 = vmatpush1.bf16.msra.mxu0 0
        %569 = vmatprep.subr.bf16.mxu0 0
        %570 = vmatpush1.bf16.msra.mxu0 0
        %571 = vmatprep.subr.bf16.mxu0 0
        %572 = vmatpush1.bf16.msra.mxu0 0
        %573 = vmatprep.subr.bf16.mxu0 0
        %574 = vmatpush1.bf16.msra.mxu0 0
        %575 = vmatprep.subr.bf16.mxu0 0
        %576 = vmatpush1.bf16.msra.mxu0 0
        %577 = vmatprep.subr.bf16.mxu0 0
        %578 = vmatpush1.bf16.msra.mxu0 0
        %579 = vmatprep.subr.bf16.mxu0 0
        %580 = vmatpush1.bf16.msra.mxu0 0
        %581 = vmatprep.mubr.bf16.mxu0 0
        %582 = vmatmul.mubr.bf16.gmra.mrb[0].mxu0 %v485
        %v583 = vpop.f32.mrb[0].mxu0
        %v584 = vadd.f32 %v451, %v583
        %v585 = vpop.f32.mrb[0].mxu0
        %v586 = vpop.f32.mrb[0].mxu0
        %v587 = vadd.f32 %v451, %v586
        %v588 = vpop.f32.mrb[0].mxu0
        %589 = vmatprep.mubr.bf16.mxu0 0
        %590 = vmatmul.mubr.bf16.gmra.mrb[0].mxu0 %v486
        %v591 = vpop.f32.mrb[0].mxu0
        %v592 = vadd.f32 %v451, %v591
        %v593 = vpop.f32.mrb[0].mxu0
        %v594 = vpop.f32.mrb[0].mxu0
        %v595 = vadd.f32 %v451, %v594
        %v596 = vpop.f32.mrb[0].mxu0
        %597 = vmatprep.mubr.bf16.mxu0 0
        %598 = vmatmul.mubr.bf16.gmra.mrb[0].mxu0 %v487
        %v599 = vpop.f32.mrb[0].mxu0
        %v600 = vadd.f32 %v451, %v599
        %v601 = vpop.f32.mrb[0].mxu0
        %v602 = vpop.f32.mrb[0].mxu0
        %v603 = vadd.f32 %v451, %v602
        %v604 = vpop.f32.mrb[0].mxu0
        %605 = vmatprep.mubr.bf16.mxu0 0
        %606 = vmatmul.mubr.bf16.gmra.mrb[0].mxu0 %v488
        %v607 = vpop.f32.mrb[0].mxu0
        %v608 = vadd.f32 %v451, %v607
        %v609 = vpop.f32.mrb[0].mxu0
        %v610 = vpop.f32.mrb[0].mxu0
        %v611 = vadd.f32 %v451, %v610
        %v612 = vpop.f32.mrb[0].mxu0
        %613 = vmatprep.mubr.bf16.mxu0 0
        %614 = vmatmul.mubr.bf16.gmra.mrb[0].mxu0 %v489
        %v615 = vpop.f32.mrb[0].mxu0
        %v616 = vadd.f32 %v451, %v615
        %v617 = vpop.f32.mrb[0].mxu0
        %v618 = vpop.f32.mrb[0].mxu0
        %v619 = vadd.f32 %v451, %v618
        %v620 = vpop.f32.mrb[0].mxu0
        %621 = vmatprep.mubr.bf16.mxu0 0
        %622 = vmatmul.mubr.bf16.gmra.mrb[0].mxu0 %v490
        %v623 = vpop.f32.mrb[0].mxu0
        %v624 = vadd.f32 %v451, %v623
        %v625 = vpop.f32.mrb[0].mxu0
        %v626 = vpop.f32.mrb[0].mxu0
        %v627 = vadd.f32 %v451, %v626
        %v628 = vpop.f32.mrb[0].mxu0
        %629 = vmatprep.mubr.bf16.mxu0 0
        %630 = vmatmul.mubr.bf16.gmra.mrb[0].mxu0 %v491
        %v631 = vpop.f32.mrb[0].mxu0
        %v632 = vadd.f32 %v451, %v631
        %v633 = vpop.f32.mrb[0].mxu0
        %v634 = vpop.f32.mrb[0].mxu0
        %v635 = vadd.f32 %v451, %v634
        %v636 = vpop.f32.mrb[0].mxu0
        %637 = vmatprep.mubr.bf16.mxu0 0
        %638 = vmatmul.mubr.bf16.gmra.mrb[0].mxu0 %v492
        %v639 = vpop.f32.mrb[0].mxu0
        %v640 = vadd.f32 %v451, %v639
        %v641 = vpop.f32.mrb[0].mxu0
        %v642 = vpop.f32.mrb[0].mxu0
        %v643 = vadd.f32 %v451, %v642
        %v644 = vpop.f32.mrb[0].mxu0
        %645 = vdwg.mxu0
        %v646 = vmax.f32 %v584, 0.0
        %v647 = vmax.f32 %v587, 0.0
        %v648 = vmax.f32 %v592, 0.0
        %v649 = vmax.f32 %v595, 0.0
        %v650 = vmax.f32 %v600, 0.0
        %v651 = vmax.f32 %v603, 0.0
        %v652 = vmax.f32 %v608, 0.0
        %v653 = vmax.f32 %v611, 0.0
        %v654 = vmax.f32 %v616, 0.0
        %v655 = vmax.f32 %v619, 0.0
        %v656 = vmax.f32 %v624, 0.0
        %v657 = vmax.f32 %v627, 0.0
        %v658 = vmax.f32 %v632, 0.0
        %v659 = vmax.f32 %v635, 0.0
        %v660 = vmax.f32 %v640, 0.0
        %v661 = vmax.f32 %v643, 0.0
        %v662 = vpack.c.bf16 %v647, %v646
        %v663 = vpack.c.bf16 %v649, %v648
        %v664 = vpack.c.bf16 %v651, %v650
        %v665 = vpack.c.bf16 %v653, %v652
        %v666 = vpack.c.bf16 %v655, %v654
        %v667 = vpack.c.bf16 %v657, %v656
        %v668 = vpack.c.bf16 %v659, %v658
        %v669 = vpack.c.bf16 %v661, %v660
        %v670 = vld [vmem:[#allocation7] sm:$0xf]
        %v671 = vld [vmem:[#allocation7 + $0x4] sm:$0xf]
        %v672 = vld [vmem:[#allocation7 + $0x8] sm:$0xf]
        %v673 = vld [vmem:[#allocation7 + $0xc] sm:$0xf]
        %v674 = vld [vmem:[#allocation7 + $0x10] sm:$0xf]
        %v675 = vld [vmem:[#allocation7 + $0x14] sm:$0xf]
        %v676 = vld [vmem:[#allocation7 + $0x18] sm:$0xf]
        %v677 = vld [vmem:[#allocation7 + $0x1c] sm:$0xf]
        %v678 = vld [vmem:[#allocation7 + $0x20] sm:$0xf]
        %v679 = vld [vmem:[#allocation7 + $0x24] sm:$0xf]
        %v680 = vld [vmem:[#allocation7 + $0x28] sm:$0xf]
        %v681 = vld [vmem:[#allocation7 + $0x2c] sm:$0xf]
        %v682 = vld [vmem:[#allocation7 + $0x30] sm:$0xf]
        %v683 = vld [vmem:[#allocation7 + $0x34] sm:$0xf]
        %v684 = vld [vmem:[#allocation7 + $0x38] sm:$0xf]
        %v685 = vld [vmem:[#allocation7 + $0x3c] sm:$0xf]
        %v686 = vld [vmem:[%s7 + $0x1] sm:$0x1]
        %v688 = vlaneseq
        %v689 = vshrl.u32 %v688, 7
        %v690 = vsub.s32 0, %v689
        %v691 = vrot.slane %v686, %v690
        %v709 = vunpack.c.l.b16 %v670
        %v710 = vunpack.c.l.b16 %v671
        %v711 = vunpack.c.l.b16 %v672
        %v712 = vunpack.c.l.b16 %v673
        %v713 = vunpack.c.l.b16 %v674
        %v714 = vunpack.c.l.b16 %v675
        %v715 = vunpack.c.l.b16 %v676
        %v716 = vunpack.c.l.b16 %v677
        %v717 = vunpack.c.l.b16 %v678
        %v718 = vunpack.c.l.b16 %v679
        %v719 = vunpack.c.l.b16 %v680
        %v720 = vunpack.c.l.b16 %v681
        %v721 = vunpack.c.l.b16 %v682
        %v722 = vunpack.c.l.b16 %v683
        %v723 = vunpack.c.l.b16 %v684
        %v724 = vunpack.c.l.b16 %v685
        %v725 = vpack.c.b16 %v710, %v709
        %v726 = vpack.c.b16 %v712, %v711
        %v727 = vpack.c.b16 %v714, %v713
        %v728 = vpack.c.b16 %v716, %v715
        %v729 = vpack.c.b16 %v718, %v717
        %v730 = vpack.c.b16 %v720, %v719
        %v731 = vpack.c.b16 %v722, %v721
        %v732 = vpack.c.b16 %v724, %v723
        %741 = vmatprep.subr.bf16.mxu0 0
        %742 = vmatpush1.bf16.msra.mxu0 %v725
        %743 = vmatprep.subr.bf16.mxu0 0
        %744 = vmatpush1.bf16.msra.mxu0 %v726
        %745 = vmatprep.subr.bf16.mxu0 0
        %746 = vmatpush1.bf16.msra.mxu0 %v727
        %747 = vmatprep.subr.bf16.mxu0 0
        %748 = vmatpush1.bf16.msra.mxu0 %v728
        %749 = vmatprep.subr.bf16.mxu0 0
        %750 = vmatpush1.bf16.msra.mxu0 %v729
        %751 = vmatprep.subr.bf16.mxu0 0
        %752 = vmatpush1.bf16.msra.mxu0 %v730
        %753 = vmatprep.subr.bf16.mxu0 0
        %754 = vmatpush1.bf16.msra.mxu0 %v731
        %755 = vmatprep.subr.bf16.mxu0 0
        %756 = vmatpush1.bf16.msra.mxu0 %v732
        %757 = vmatprep.subr.bf16.mxu0 0
        %758 = vmatpush1.bf16.msra.mxu0 0
        %759 = vmatprep.subr.bf16.mxu0 0
        %760 = vmatpush1.bf16.msra.mxu0 0
        %761 = vmatprep.subr.bf16.mxu0 0
        %762 = vmatpush1.bf16.msra.mxu0 0
        %763 = vmatprep.subr.bf16.mxu0 0
        %764 = vmatpush1.bf16.msra.mxu0 0
        %765 = vmatprep.subr.bf16.mxu0 0
        %766 = vmatpush1.bf16.msra.mxu0 0
        %767 = vmatprep.subr.bf16.mxu0 0
        %768 = vmatpush1.bf16.msra.mxu0 0
        %769 = vmatprep.subr.bf16.mxu0 0
        %770 = vmatpush1.bf16.msra.mxu0 0
        %771 = vmatprep.subr.bf16.mxu0 0
        %772 = vmatpush1.bf16.msra.mxu0 0
        %773 = vmatprep.mubr.bf16.mxu0 0
        %774 = vmatmul.mubr.bf16.gmra.mrb[0].mxu0 %v662
        %v775 = vpop.f32.mrb[0].mxu0
        %v776 = vadd.f32 %v691, %v775
        %v777 = vpop.f32.mrb[0].mxu0
        %v778 = vpop.f32.mrb[0].mxu0
        %v779 = vadd.f32 %v691, %v778
        %v780 = vpop.f32.mrb[0].mxu0
        %781 = vmatprep.mubr.bf16.mxu0 0
        %782 = vmatmul.mubr.bf16.gmra.mrb[0].mxu0 %v663
        %v783 = vpop.f32.mrb[0].mxu0
        %v784 = vadd.f32 %v691, %v783
        %v785 = vpop.f32.mrb[0].mxu0
        %v786 = vpop.f32.mrb[0].mxu0
        %v787 = vadd.f32 %v691, %v786
        %v788 = vpop.f32.mrb[0].mxu0
        %789 = vmatprep.mubr.bf16.mxu0 0
        %790 = vmatmul.mubr.bf16.gmra.mrb[0].mxu0 %v664
        %v791 = vpop.f32.mrb[0].mxu0
        %v792 = vadd.f32 %v691, %v791
        %v793 = vpop.f32.mrb[0].mxu0
        %v794 = vpop.f32.mrb[0].mxu0
        %v795 = vadd.f32 %v691, %v794
        %v796 = vpop.f32.mrb[0].mxu0
        %797 = vmatprep.mubr.bf16.mxu0 0
        %798 = vmatmul.mubr.bf16.gmra.mrb[0].mxu0 %v665
        %v799 = vpop.f32.mrb[0].mxu0
        %v800 = vadd.f32 %v691, %v799
        %v801 = vpop.f32.mrb[0].mxu0
        %v802 = vpop.f32.mrb[0].mxu0
        %v803 = vadd.f32 %v691, %v802
        %v804 = vpop.f32.mrb[0].mxu0
        %805 = vmatprep.mubr.bf16.mxu0 0
        %806 = vmatmul.mubr.bf16.gmra.mrb[0].mxu0 %v666
        %v807 = vpop.f32.mrb[0].mxu0
        %v808 = vadd.f32 %v691, %v807
        %v809 = vpop.f32.mrb[0].mxu0
        %v810 = vpop.f32.mrb[0].mxu0
        %v811 = vadd.f32 %v691, %v810
        %v812 = vpop.f32.mrb[0].mxu0
        %813 = vmatprep.mubr.bf16.mxu0 0
        %814 = vmatmul.mubr.bf16.gmra.mrb[0].mxu0 %v667
        %v815 = vpop.f32.mrb[0].mxu0
        %v816 = vadd.f32 %v691, %v815
        %v817 = vpop.f32.mrb[0].mxu0
        %v818 = vpop.f32.mrb[0].mxu0
        %v819 = vadd.f32 %v691, %v818
        %v820 = vpop.f32.mrb[0].mxu0
        %821 = vmatprep.mubr.bf16.mxu0 0
        %822 = vmatmul.mubr.bf16.gmra.mrb[0].mxu0 %v668
        %v823 = vpop.f32.mrb[0].mxu0
        %v824 = vadd.f32 %v691, %v823
        %v825 = vpop.f32.mrb[0].mxu0
        %v826 = vpop.f32.mrb[0].mxu0
        %v827 = vadd.f32 %v691, %v826
        %v828 = vpop.f32.mrb[0].mxu0
        %829 = vmatprep.mubr.bf16.mxu0 0
        %830 = vmatmul.mubr.bf16.gmra.mrb[0].mxu0 %v669
        %v831 = vpop.f32.mrb[0].mxu0
        %v832 = vadd.f32 %v691, %v831
        %v833 = vpop.f32.mrb[0].mxu0
        %v834 = vpop.f32.mrb[0].mxu0
        %v835 = vadd.f32 %v691, %v834
        %v836 = vpop.f32.mrb[0].mxu0
        %837 = vdwg.mxu0
        %v838 = vmax.f32 %v776, 0.0
        %v839 = vmax.f32 %v779, 0.0
        %v840 = vmax.f32 %v784, 0.0
        %v841 = vmax.f32 %v787, 0.0
        %v842 = vmax.f32 %v792, 0.0
        %v843 = vmax.f32 %v795, 0.0
        %v844 = vmax.f32 %v800, 0.0
        %v845 = vmax.f32 %v803, 0.0
        %v846 = vmax.f32 %v808, 0.0
        %v847 = vmax.f32 %v811, 0.0
        %v848 = vmax.f32 %v816, 0.0
        %v849 = vmax.f32 %v819, 0.0
        %v850 = vmax.f32 %v824, 0.0
        %v851 = vmax.f32 %v827, 0.0
        %v852 = vmax.f32 %v832, 0.0
        %v853 = vmax.f32 %v835, 0.0
        %v854 = vpack.c.bf16 %v839, %v838
        %v855 = vpack.c.bf16 %v841, %v840
        %v856 = vpack.c.bf16 %v843, %v842
        %v857 = vpack.c.bf16 %v845, %v844
        %v858 = vpack.c.bf16 %v847, %v846
        %v859 = vpack.c.bf16 %v849, %v848
        %v860 = vpack.c.bf16 %v851, %v850
        %v861 = vpack.c.bf16 %v853, %v852
        %v862 = vld [vmem:[#allocation8] sm:$0xf]
        %v863 = vld [vmem:[#allocation8 + $0x4] sm:$0xf]
        %v864 = vld [vmem:[#allocation8 + $0x8] sm:$0xf]
        %v865 = vld [vmem:[#allocation8 + $0xc] sm:$0xf]
        %v866 = vld [vmem:[#allocation8 + $0x10] sm:$0xf]
        %v867 = vld [vmem:[#allocation8 + $0x14] sm:$0xf]
        %v868 = vld [vmem:[#allocation8 + $0x18] sm:$0xf]
        %v869 = vld [vmem:[#allocation8 + $0x1c] sm:$0xf]
        %v870 = vld [vmem:[#allocation8 + $0x20] sm:$0xf]
        %v871 = vld [vmem:[#allocation8 + $0x24] sm:$0xf]
        %v872 = vld [vmem:[#allocation8 + $0x28] sm:$0xf]
        %v873 = vld [vmem:[#allocation8 + $0x2c] sm:$0xf]
        %v874 = vld [vmem:[#allocation8 + $0x30] sm:$0xf]
        %v875 = vld [vmem:[#allocation8 + $0x34] sm:$0xf]
        %v876 = vld [vmem:[#allocation8 + $0x38] sm:$0xf]
        %v877 = vld [vmem:[#allocation8 + $0x3c] sm:$0xf]
        %v878 = vld [vmem:[%s7 + $0x2] sm:$0x1]
        %v880 = vlaneseq
        %v881 = vshrl.u32 %v880, 7
        %v882 = vsub.s32 0, %v881
        %v883 = vrot.slane %v878, %v882
        %v901 = vunpack.c.l.b16 %v862
        %v902 = vunpack.c.l.b16 %v863
        %v903 = vunpack.c.l.b16 %v864
        %v904 = vunpack.c.l.b16 %v865
        %v905 = vunpack.c.l.b16 %v866
        %v906 = vunpack.c.l.b16 %v867
        %v907 = vunpack.c.l.b16 %v868
        %v908 = vunpack.c.l.b16 %v869
        %v909 = vunpack.c.l.b16 %v870
        %v910 = vunpack.c.l.b16 %v871
        %v911 = vunpack.c.l.b16 %v872
        %v912 = vunpack.c.l.b16 %v873
        %v913 = vunpack.c.l.b16 %v874
        %v914 = vunpack.c.l.b16 %v875
        %v915 = vunpack.c.l.b16 %v876
        %v916 = vunpack.c.l.b16 %v877
        %v917 = vpack.c.b16 %v902, %v901
        %v918 = vpack.c.b16 %v904, %v903
        %v919 = vpack.c.b16 %v906, %v905
        %v920 = vpack.c.b16 %v908, %v907
        %v921 = vpack.c.b16 %v910, %v909
        %v922 = vpack.c.b16 %v912, %v911
        %v923 = vpack.c.b16 %v914, %v913
        %v924 = vpack.c.b16 %v916, %v915
        %933 = vmatprep.subr.bf16.mxu0 0
        %934 = vmatpush1.bf16.msra.mxu0 %v917
        %935 = vmatprep.subr.bf16.mxu0 0
        %936 = vmatpush1.bf16.msra.mxu0 %v918
        %937 = vmatprep.subr.bf16.mxu0 0
        %938 = vmatpush1.bf16.msra.mxu0 %v919
        %939 = vmatprep.subr.bf16.mxu0 0
        %940 = vmatpush1.bf16.msra.mxu0 %v920
        %941 = vmatprep.subr.bf16.mxu0 0
        %942 = vmatpush1.bf16.msra.mxu0 %v921
        %943 = vmatprep.subr.bf16.mxu0 0
        %944 = vmatpush1.bf16.msra.mxu0 %v922
        %945 = vmatprep.subr.bf16.mxu0 0
        %946 = vmatpush1.bf16.msra.mxu0 %v923
        %947 = vmatprep.subr.bf16.mxu0 0
        %948 = vmatpush1.bf16.msra.mxu0 %v924
        %949 = vmatprep.subr.bf16.mxu0 0
        %950 = vmatpush1.bf16.msra.mxu0 0
        %951 = vmatprep.subr.bf16.mxu0 0
        %952 = vmatpush1.bf16.msra.mxu0 0
        %953 = vmatprep.subr.bf16.mxu0 0
        %954 = vmatpush1.bf16.msra.mxu0 0
        %955 = vmatprep.subr.bf16.mxu0 0
        %956 = vmatpush1.bf16.msra.mxu0 0
        %957 = vmatprep.subr.bf16.mxu0 0
        %958 = vmatpush1.bf16.msra.mxu0 0
        %959 = vmatprep.subr.bf16.mxu0 0
        %960 = vmatpush1.bf16.msra.mxu0 0
        %961 = vmatprep.subr.bf16.mxu0 0
        %962 = vmatpush1.bf16.msra.mxu0 0
        %963 = vmatprep.subr.bf16.mxu0 0
        %964 = vmatpush1.bf16.msra.mxu0 0
        %965 = vmatprep.mubr.bf16.mxu0 0
        %966 = vmatmul.mubr.bf16.gmra.mrb[0].mxu0 %v854
        %v967 = vpop.f32.mrb[0].mxu0
        %v968 = vadd.f32 %v883, %v967
        %v969 = vpop.f32.mrb[0].mxu0
        %v970 = vpop.f32.mrb[0].mxu0
        %v971 = vadd.f32 %v883, %v970
        %v972 = vpop.f32.mrb[0].mxu0
        %973 = vmatprep.mubr.bf16.mxu0 0
        %974 = vmatmul.mubr.bf16.gmra.mrb[0].mxu0 %v855
        %v975 = vpop.f32.mrb[0].mxu0
        %v976 = vadd.f32 %v883, %v975
        %v977 = vpop.f32.mrb[0].mxu0
        %v978 = vpop.f32.mrb[0].mxu0
        %v979 = vadd.f32 %v883, %v978
        %v980 = vpop.f32.mrb[0].mxu0
        %981 = vmatprep.mubr.bf16.mxu0 0
        %982 = vmatmul.mubr.bf16.gmra.mrb[0].mxu0 %v856
        %v983 = vpop.f32.mrb[0].mxu0
        %v984 = vadd.f32 %v883, %v983
        %v985 = vpop.f32.mrb[0].mxu0
        %v986 = vpop.f32.mrb[0].mxu0
        %v987 = vadd.f32 %v883, %v986
        %v988 = vpop.f32.mrb[0].mxu0
        %989 = vmatprep.mubr.bf16.mxu0 0
        %990 = vmatmul.mubr.bf16.gmra.mrb[0].mxu0 %v857
        %v991 = vpop.f32.mrb[0].mxu0
        %v992 = vadd.f32 %v883, %v991
        %v993 = vpop.f32.mrb[0].mxu0
        %v994 = vpop.f32.mrb[0].mxu0
        %v995 = vadd.f32 %v883, %v994
        %v996 = vpop.f32.mrb[0].mxu0
        %997 = vmatprep.mubr.bf16.mxu0 0
        %998 = vmatmul.mubr.bf16.gmra.mrb[0].mxu0 %v858
        %v999 = vpop.f32.mrb[0].mxu0
        %v1000 = vadd.f32 %v883, %v999
        %v1001 = vpop.f32.mrb[0].mxu0
        %v1002 = vpop.f32.mrb[0].mxu0
        %v1003 = vadd.f32 %v883, %v1002
        %v1004 = vpop.f32.mrb[0].mxu0
        %1005 = vmatprep.mubr.bf16.mxu0 0
        %1006 = vmatmul.mubr.bf16.gmra.mrb[0].mxu0 %v859
        %v1007 = vpop.f32.mrb[0].mxu0
        %v1008 = vadd.f32 %v883, %v1007
        %v1009 = vpop.f32.mrb[0].mxu0
        %v1010 = vpop.f32.mrb[0].mxu0
        %v1011 = vadd.f32 %v883, %v1010
        %v1012 = vpop.f32.mrb[0].mxu0
        %1013 = vmatprep.mubr.bf16.mxu0 0
        %1014 = vmatmul.mubr.bf16.gmra.mrb[0].mxu0 %v860
        %v1015 = vpop.f32.mrb[0].mxu0
        %v1016 = vadd.f32 %v883, %v1015
        %v1017 = vpop.f32.mrb[0].mxu0
        %v1018 = vpop.f32.mrb[0].mxu0
        %v1019 = vadd.f32 %v883, %v1018
        %v1020 = vpop.f32.mrb[0].mxu0
        %1021 = vmatprep.mubr.bf16.mxu0 0
        %1022 = vmatmul.mubr.bf16.gmra.mrb[0].mxu0 %v861
        %v1023 = vpop.f32.mrb[0].mxu0
        %v1024 = vadd.f32 %v883, %v1023
        %v1025 = vpop.f32.mrb[0].mxu0
        %v1026 = vpop.f32.mrb[0].mxu0
        %v1027 = vadd.f32 %v883, %v1026
        %v1028 = vpop.f32.mrb[0].mxu0
        %1029 = vdwg.mxu0
        %v1030 = vmax.f32 %v968, 0.0
        %v1031 = vmax.f32 %v971, 0.0
        %v1032 = vmax.f32 %v976, 0.0
        %v1033 = vmax.f32 %v979, 0.0
        %v1034 = vmax.f32 %v984, 0.0
        %v1035 = vmax.f32 %v987, 0.0
        %v1036 = vmax.f32 %v992, 0.0
        %v1037 = vmax.f32 %v995, 0.0
        %v1038 = vmax.f32 %v1000, 0.0
        %v1039 = vmax.f32 %v1003, 0.0
        %v1040 = vmax.f32 %v1008, 0.0
        %v1041 = vmax.f32 %v1011, 0.0
        %v1042 = vmax.f32 %v1016, 0.0
        %v1043 = vmax.f32 %v1019, 0.0
        %v1044 = vmax.f32 %v1024, 0.0
        %v1045 = vmax.f32 %v1027, 0.0
        %v1046 = vpack.c.bf16 %v1031, %v1030
        %v1047 = vpack.c.bf16 %v1033, %v1032
        %v1048 = vpack.c.bf16 %v1035, %v1034
        %v1049 = vpack.c.bf16 %v1037, %v1036
        %v1050 = vpack.c.bf16 %v1039, %v1038
        %v1051 = vpack.c.bf16 %v1041, %v1040
        %v1052 = vpack.c.bf16 %v1043, %v1042
        %v1053 = vpack.c.bf16 %v1045, %v1044
        %v1054 = vld [vmem:[#allocation10] sm:$0xf]
        %v1055 = vld [vmem:[#allocation10 + $0x4] sm:$0xf]
        %v1056 = vld [vmem:[#allocation10 + $0x8] sm:$0xf]
        %v1057 = vld [vmem:[#allocation10 + $0xc] sm:$0xf]
        %v1058 = vld [vmem:[#allocation10 + $0x10] sm:$0xf]
        %v1059 = vld [vmem:[#allocation10 + $0x14] sm:$0xf]
        %v1060 = vld [vmem:[#allocation10 + $0x18] sm:$0xf]
        %v1061 = vld [vmem:[#allocation10 + $0x1c] sm:$0xf]
        %v1062 = vld [vmem:[#allocation10 + $0x20] sm:$0xf]
        %v1063 = vld [vmem:[#allocation10 + $0x24] sm:$0xf]
        %v1064 = vld [vmem:[#allocation10 + $0x28] sm:$0xf]
        %v1065 = vld [vmem:[#allocation10 + $0x2c] sm:$0xf]
        %v1066 = vld [vmem:[#allocation10 + $0x30] sm:$0xf]
        %v1067 = vld [vmem:[#allocation10 + $0x34] sm:$0xf]
        %v1068 = vld [vmem:[#allocation10 + $0x38] sm:$0xf]
        %v1069 = vld [vmem:[#allocation10 + $0x3c] sm:$0xf]
        %v1070 = vld [vmem:[%s7 + $0x3] sm:$0x1]
        %v1072 = vlaneseq
        %v1073 = vshrl.u32 %v1072, 7
        %v1074 = vsub.s32 0, %v1073
        %v1075 = vrot.slane %v1070, %v1074
        %v1093 = vunpack.c.l.b16 %v1054
        %v1094 = vunpack.c.l.b16 %v1055
        %v1095 = vunpack.c.l.b16 %v1056
        %v1096 = vunpack.c.l.b16 %v1057
        %v1097 = vunpack.c.l.b16 %v1058
        %v1098 = vunpack.c.l.b16 %v1059
        %v1099 = vunpack.c.l.b16 %v1060
        %v1100 = vunpack.c.l.b16 %v1061
        %v1101 = vunpack.c.l.b16 %v1062
        %v1102 = vunpack.c.l.b16 %v1063
        %v1103 = vunpack.c.l.b16 %v1064
        %v1104 = vunpack.c.l.b16 %v1065
        %v1105 = vunpack.c.l.b16 %v1066
        %v1106 = vunpack.c.l.b16 %v1067
        %v1107 = vunpack.c.l.b16 %v1068
        %v1108 = vunpack.c.l.b16 %v1069
        %v1109 = vpack.c.b16 %v1094, %v1093
        %v1110 = vpack.c.b16 %v1096, %v1095
        %v1111 = vpack.c.b16 %v1098, %v1097
        %v1112 = vpack.c.b16 %v1100, %v1099
        %v1113 = vpack.c.b16 %v1102, %v1101
        %v1114 = vpack.c.b16 %v1104, %v1103
        %v1115 = vpack.c.b16 %v1106, %v1105
        %v1116 = vpack.c.b16 %v1108, %v1107
        %1125 = vmatprep.subr.bf16.mxu0 0
        %1126 = vmatpush1.bf16.msra.mxu0 %v1109
        %1127 = vmatprep.subr.bf16.mxu0 0
        %1128 = vmatpush1.bf16.msra.mxu0 %v1110
        %1129 = vmatprep.subr.bf16.mxu0 0
        %1130 = vmatpush1.bf16.msra.mxu0 %v1111
        %1131 = vmatprep.subr.bf16.mxu0 0
        %1132 = vmatpush1.bf16.msra.mxu0 %v1112
        %1133 = vmatprep.subr.bf16.mxu0 0
        %1134 = vmatpush1.bf16.msra.mxu0 %v1113
        %1135 = vmatprep.subr.bf16.mxu0 0
        %1136 = vmatpush1.bf16.msra.mxu0 %v1114
        %1137 = vmatprep.subr.bf16.mxu0 0
        %1138 = vmatpush1.bf16.msra.mxu0 %v1115
        %1139 = vmatprep.subr.bf16.mxu0 0
        %1140 = vmatpush1.bf16.msra.mxu0 %v1116
        %1141 = vmatprep.subr.bf16.mxu0 0
        %1142 = vmatpush1.bf16.msra.mxu0 0
        %1143 = vmatprep.subr.bf16.mxu0 0
        %1144 = vmatpush1.bf16.msra.mxu0 0
        %1145 = vmatprep.subr.bf16.mxu0 0
        %1146 = vmatpush1.bf16.msra.mxu0 0
        %1147 = vmatprep.subr.bf16.mxu0 0
        %1148 = vmatpush1.bf16.msra.mxu0 0
        %1149 = vmatprep.subr.bf16.mxu0 0
        %1150 = vmatpush1.bf16.msra.mxu0 0
        %1151 = vmatprep.subr.bf16.mxu0 0
        %1152 = vmatpush1.bf16.msra.mxu0 0
        %1153 = vmatprep.subr.bf16.mxu0 0
        %1154 = vmatpush1.bf16.msra.mxu0 0
        %1155 = vmatprep.subr.bf16.mxu0 0
        %1156 = vmatpush1.bf16.msra.mxu0 0
        %1157 = vmatprep.mubr.bf16.mxu0 0
        %1158 = vmatmul.mubr.bf16.gmra.mrb[0].mxu0 %v1046
        %v1159 = vpop.f32.mrb[0].mxu0
        %v1160 = vadd.f32 %v1075, %v1159
        %v1161 = vpop.f32.mrb[0].mxu0
        %v1162 = vpop.f32.mrb[0].mxu0
        %v1163 = vadd.f32 %v1075, %v1162
        %v1164 = vpop.f32.mrb[0].mxu0
        %1165 = vmatprep.mubr.bf16.mxu0 0
        %1166 = vmatmul.mubr.bf16.gmra.mrb[0].mxu0 %v1047
        %v1167 = vpop.f32.mrb[0].mxu0
        %v1168 = vadd.f32 %v1075, %v1167
        %v1169 = vpop.f32.mrb[0].mxu0
        %v1170 = vpop.f32.mrb[0].mxu0
        %v1171 = vadd.f32 %v1075, %v1170
        %v1172 = vpop.f32.mrb[0].mxu0
        %1173 = vmatprep.mubr.bf16.mxu0 0
        %1174 = vmatmul.mubr.bf16.gmra.mrb[0].mxu0 %v1048
        %v1175 = vpop.f32.mrb[0].mxu0
        %v1176 = vadd.f32 %v1075, %v1175
        %v1177 = vpop.f32.mrb[0].mxu0
        %v1178 = vpop.f32.mrb[0].mxu0
        %v1179 = vadd.f32 %v1075, %v1178
        %v1180 = vpop.f32.mrb[0].mxu0
        %1181 = vmatprep.mubr.bf16.mxu0 0
        %1182 = vmatmul.mubr.bf16.gmra.mrb[0].mxu0 %v1049
        %v1183 = vpop.f32.mrb[0].mxu0
        %v1184 = vadd.f32 %v1075, %v1183
        %v1185 = vpop.f32.mrb[0].mxu0
        %v1186 = vpop.f32.mrb[0].mxu0
        %v1187 = vadd.f32 %v1075, %v1186
        %v1188 = vpop.f32.mrb[0].mxu0
        %1189 = vmatprep.mubr.bf16.mxu0 0
        %1190 = vmatmul.mubr.bf16.gmra.mrb[0].mxu0 %v1050
        %v1191 = vpop.f32.mrb[0].mxu0
        %v1192 = vadd.f32 %v1075, %v1191
        %v1193 = vpop.f32.mrb[0].mxu0
        %v1194 = vpop.f32.mrb[0].mxu0
        %v1195 = vadd.f32 %v1075, %v1194
        %v1196 = vpop.f32.mrb[0].mxu0
        %1197 = vmatprep.mubr.bf16.mxu0 0
        %1198 = vmatmul.mubr.bf16.gmra.mrb[0].mxu0 %v1051
        %v1199 = vpop.f32.mrb[0].mxu0
        %v1200 = vadd.f32 %v1075, %v1199
        %v1201 = vpop.f32.mrb[0].mxu0
        %v1202 = vpop.f32.mrb[0].mxu0
        %v1203 = vadd.f32 %v1075, %v1202
        %v1204 = vpop.f32.mrb[0].mxu0
        %1205 = vmatprep.mubr.bf16.mxu0 0
        %1206 = vmatmul.mubr.bf16.gmra.mrb[0].mxu0 %v1052
        %v1207 = vpop.f32.mrb[0].mxu0
        %v1208 = vadd.f32 %v1075, %v1207
        %v1209 = vpop.f32.mrb[0].mxu0
        %v1210 = vpop.f32.mrb[0].mxu0
        %v1211 = vadd.f32 %v1075, %v1210
        %v1212 = vpop.f32.mrb[0].mxu0
        %1213 = vmatprep.mubr.bf16.mxu0 0
        %1214 = vmatmul.mubr.bf16.gmra.mrb[0].mxu0 %v1053
        %v1215 = vpop.f32.mrb[0].mxu0
        %v1216 = vadd.f32 %v1075, %v1215
        %v1217 = vpop.f32.mrb[0].mxu0
        %v1218 = vpop.f32.mrb[0].mxu0
        %v1219 = vadd.f32 %v1075, %v1218
        %v1220 = vpop.f32.mrb[0].mxu0
        %1221 = vdwg.mxu0
        %v1222 = vpack.c.bf16 %v1163, %v1160
        %v1223 = vpack.c.bf16 %v1171, %v1168
        %v1224 = vpack.c.bf16 %v1179, %v1176
        %v1225 = vpack.c.bf16 %v1187, %v1184
        %v1226 = vpack.c.bf16 %v1195, %v1192
        %v1227 = vpack.c.bf16 %v1203, %v1200
        %v1228 = vpack.c.bf16 %v1211, %v1208
        %v1229 = vpack.c.bf16 %v1219, %v1216
        %v1230 = vld [vmem:[#allocation11] sm:$0xf]
        %v1231 = vld [vmem:[#allocation11 + $0x4] sm:$0xf]
        %v1232 = vld [vmem:[#allocation11 + $0x8] sm:$0xf]
        %v1233 = vld [vmem:[#allocation11 + $0xc] sm:$0xf]
        %v1234 = vld [vmem:[#allocation11 + $0x10] sm:$0xf]
        %v1235 = vld [vmem:[#allocation11 + $0x14] sm:$0xf]
        %v1236 = vld [vmem:[#allocation11 + $0x18] sm:$0xf]
        %v1237 = vld [vmem:[#allocation11 + $0x1c] sm:$0xf]
        %v1238 = vld [vmem:[#allocation11 + $0x20] sm:$0xf]
        %v1239 = vld [vmem:[#allocation11 + $0x24] sm:$0xf]
        %v1240 = vld [vmem:[#allocation11 + $0x28] sm:$0xf]
        %v1241 = vld [vmem:[#allocation11 + $0x2c] sm:$0xf]
        %v1242 = vld [vmem:[#allocation11 + $0x30] sm:$0xf]
        %v1243 = vld [vmem:[#allocation11 + $0x34] sm:$0xf]
        %v1244 = vld [vmem:[#allocation11 + $0x38] sm:$0xf]
        %v1245 = vld [vmem:[#allocation11 + $0x3c] sm:$0xf]
        %v1246 = vld [vmem:[%s7 + $0x4] sm:$0x1]
        %v1248 = vlaneseq
        %v1249 = vshrl.u32 %v1248, 7
        %v1250 = vsub.s32 0, %v1249
        %v1251 = vrot.slane %v1246, %v1250
        %v1269 = vunpack.c.l.b16 %v1230
        %v1270 = vunpack.c.l.b16 %v1231
        %v1271 = vunpack.c.l.b16 %v1232
        %v1272 = vunpack.c.l.b16 %v1233
        %v1273 = vunpack.c.l.b16 %v1234
        %v1274 = vunpack.c.l.b16 %v1235
        %v1275 = vunpack.c.l.b16 %v1236
        %v1276 = vunpack.c.l.b16 %v1237
        %v1277 = vunpack.c.l.b16 %v1238
        %v1278 = vunpack.c.l.b16 %v1239
        %v1279 = vunpack.c.l.b16 %v1240
        %v1280 = vunpack.c.l.b16 %v1241
        %v1281 = vunpack.c.l.b16 %v1242
        %v1282 = vunpack.c.l.b16 %v1243
        %v1283 = vunpack.c.l.b16 %v1244
        %v1284 = vunpack.c.l.b16 %v1245
        %v1285 = vpack.c.b16 %v1270, %v1269
        %v1286 = vpack.c.b16 %v1272, %v1271
        %v1287 = vpack.c.b16 %v1274, %v1273
        %v1288 = vpack.c.b16 %v1276, %v1275
        %v1289 = vpack.c.b16 %v1278, %v1277
        %v1290 = vpack.c.b16 %v1280, %v1279
        %v1291 = vpack.c.b16 %v1282, %v1281
        %v1292 = vpack.c.b16 %v1284, %v1283
        %1301 = vmatprep.subr.bf16.mxu0 0
        %1302 = vmatpush1.bf16.msra.mxu0 %v1285
        %1303 = vmatprep.subr.bf16.mxu0 0
        %1304 = vmatpush1.bf16.msra.mxu0 %v1286
        %1305 = vmatprep.subr.bf16.mxu0 0
        %1306 = vmatpush1.bf16.msra.mxu0 %v1287
        %1307 = vmatprep.subr.bf16.mxu0 0
        %1308 = vmatpush1.bf16.msra.mxu0 %v1288
        %1309 = vmatprep.subr.bf16.mxu0 0
        %1310 = vmatpush1.bf16.msra.mxu0 %v1289
        %1311 = vmatprep.subr.bf16.mxu0 0
        %1312 = vmatpush1.bf16.msra.mxu0 %v1290
        %1313 = vmatprep.subr.bf16.mxu0 0
        %1314 = vmatpush1.bf16.msra.mxu0 %v1291
        %1315 = vmatprep.subr.bf16.mxu0 0
        %1316 = vmatpush1.bf16.msra.mxu0 %v1292
        %1317 = vmatprep.subr.bf16.mxu0 0
        %1318 = vmatpush1.bf16.msra.mxu0 0
        %1319 = vmatprep.subr.bf16.mxu0 0
        %1320 = vmatpush1.bf16.msra.mxu0 0
        %1321 = vmatprep.subr.bf16.mxu0 0
        %1322 = vmatpush1.bf16.msra.mxu0 0
        %1323 = vmatprep.subr.bf16.mxu0 0
        %1324 = vmatpush1.bf16.msra.mxu0 0
        %1325 = vmatprep.subr.bf16.mxu0 0
        %1326 = vmatpush1.bf16.msra.mxu0 0
        %1327 = vmatprep.subr.bf16.mxu0 0
        %1328 = vmatpush1.bf16.msra.mxu0 0
        %1329 = vmatprep.subr.bf16.mxu0 0
        %1330 = vmatpush1.bf16.msra.mxu0 0
        %1331 = vmatprep.subr.bf16.mxu0 0
        %1332 = vmatpush1.bf16.msra.mxu0 0
        %1333 = vmatprep.mubr.bf16.mxu0 0
        %1334 = vmatmul.mubr.bf16.gmra.mrb[0].mxu0 %v1222
        %v1335 = vpop.f32.mrb[0].mxu0
        %v1336 = vadd.f32 %v1251, %v1335
        %v1337 = vpop.f32.mrb[0].mxu0
        %v1338 = vpop.f32.mrb[0].mxu0
        %v1339 = vadd.f32 %v1251, %v1338
        %v1340 = vpop.f32.mrb[0].mxu0
        %1341 = vmatprep.mubr.bf16.mxu0 0
        %1342 = vmatmul.mubr.bf16.gmra.mrb[0].mxu0 %v1223
        %v1343 = vpop.f32.mrb[0].mxu0
        %v1344 = vadd.f32 %v1251, %v1343
        %v1345 = vpop.f32.mrb[0].mxu0
        %v1346 = vpop.f32.mrb[0].mxu0
        %v1347 = vadd.f32 %v1251, %v1346
        %v1348 = vpop.f32.mrb[0].mxu0
        %1349 = vmatprep.mubr.bf16.mxu0 0
        %1350 = vmatmul.mubr.bf16.gmra.mrb[0].mxu0 %v1224
        %v1351 = vpop.f32.mrb[0].mxu0
        %v1352 = vadd.f32 %v1251, %v1351
        %v1353 = vpop.f32.mrb[0].mxu0
        %v1354 = vpop.f32.mrb[0].mxu0
        %v1355 = vadd.f32 %v1251, %v1354
        %v1356 = vpop.f32.mrb[0].mxu0
        %1357 = vmatprep.mubr.bf16.mxu0 0
        %1358 = vmatmul.mubr.bf16.gmra.mrb[0].mxu0 %v1225
        %v1359 = vpop.f32.mrb[0].mxu0
        %v1360 = vadd.f32 %v1251, %v1359
        %v1361 = vpop.f32.mrb[0].mxu0
        %v1362 = vpop.f32.mrb[0].mxu0
        %v1363 = vadd.f32 %v1251, %v1362
        %v1364 = vpop.f32.mrb[0].mxu0
        %1365 = vmatprep.mubr.bf16.mxu0 0
        %1366 = vmatmul.mubr.bf16.gmra.mrb[0].mxu0 %v1226
        %v1367 = vpop.f32.mrb[0].mxu0
        %v1368 = vadd.f32 %v1251, %v1367
        %v1369 = vpop.f32.mrb[0].mxu0
        %v1370 = vpop.f32.mrb[0].mxu0
        %v1371 = vadd.f32 %v1251, %v1370
        %v1372 = vpop.f32.mrb[0].mxu0
        %1373 = vmatprep.mubr.bf16.mxu0 0
        %1374 = vmatmul.mubr.bf16.gmra.mrb[0].mxu0 %v1227
        %v1375 = vpop.f32.mrb[0].mxu0
        %v1376 = vadd.f32 %v1251, %v1375
        %v1377 = vpop.f32.mrb[0].mxu0
        %v1378 = vpop.f32.mrb[0].mxu0
        %v1379 = vadd.f32 %v1251, %v1378
        %v1380 = vpop.f32.mrb[0].mxu0
        %1381 = vmatprep.mubr.bf16.mxu0 0
        %1382 = vmatmul.mubr.bf16.gmra.mrb[0].mxu0 %v1228
        %v1383 = vpop.f32.mrb[0].mxu0
        %v1384 = vadd.f32 %v1251, %v1383
        %v1385 = vpop.f32.mrb[0].mxu0
        %v1386 = vpop.f32.mrb[0].mxu0
        %v1387 = vadd.f32 %v1251, %v1386
        %v1388 = vpop.f32.mrb[0].mxu0
        %1389 = vmatprep.mubr.bf16.mxu0 0
        %1390 = vmatmul.mubr.bf16.gmra.mrb[0].mxu0 %v1229
        %v1391 = vpop.f32.mrb[0].mxu0
        %v1392 = vadd.f32 %v1251, %v1391
        %v1393 = vpop.f32.mrb[0].mxu0
        %v1394 = vpop.f32.mrb[0].mxu0
        %v1395 = vadd.f32 %v1251, %v1394
        %v1396 = vpop.f32.mrb[0].mxu0
        %1397 = vdwg.mxu0
        %v1398 = vpack.c.bf16 %v1339, %v1336
        %v1399 = vpack.c.bf16 %v1347, %v1344
        %v1400 = vpack.c.bf16 %v1355, %v1352
        %v1401 = vpack.c.bf16 %v1363, %v1360
        %v1402 = vpack.c.bf16 %v1371, %v1368
        %v1403 = vpack.c.bf16 %v1379, %v1376
        %v1404 = vpack.c.bf16 %v1387, %v1384
        %v1405 = vpack.c.bf16 %v1395, %v1392
        %v1406 = vld [vmem:[#allocation13] sm:$0xf]
        %v1407 = vld [vmem:[#allocation13 + $0x4] sm:$0xf]
        %v1408 = vld [vmem:[#allocation13 + $0x8] sm:$0xf]
        %v1409 = vld [vmem:[#allocation13 + $0xc] sm:$0xf]
        %v1410 = vld [vmem:[#allocation13 + $0x10] sm:$0xf]
        %v1411 = vld [vmem:[#allocation13 + $0x14] sm:$0xf]
        %v1412 = vld [vmem:[#allocation13 + $0x18] sm:$0xf]
        %v1413 = vld [vmem:[#allocation13 + $0x1c] sm:$0xf]
        %v1414 = vld [vmem:[#allocation13 + $0x20] sm:$0xf]
        %v1415 = vld [vmem:[#allocation13 + $0x24] sm:$0xf]
        %v1416 = vld [vmem:[#allocation13 + $0x28] sm:$0xf]
        %v1417 = vld [vmem:[#allocation13 + $0x2c] sm:$0xf]
        %v1418 = vld [vmem:[#allocation13 + $0x30] sm:$0xf]
        %v1419 = vld [vmem:[#allocation13 + $0x34] sm:$0xf]
        %v1420 = vld [vmem:[#allocation13 + $0x38] sm:$0xf]
        %v1421 = vld [vmem:[#allocation13 + $0x3c] sm:$0xf]
        %v1422 = vld [vmem:[%s7 + $0x5] sm:$0x1]
        %v1424 = vlaneseq
        %v1425 = vshrl.u32 %v1424, 7
        %v1426 = vsub.s32 0, %v1425
        %v1427 = vrot.slane %v1422, %v1426
        %v1445 = vunpack.c.l.b16 %v1406
        %v1446 = vunpack.c.l.b16 %v1407
        %v1447 = vunpack.c.l.b16 %v1408
        %v1448 = vunpack.c.l.b16 %v1409
        %v1449 = vunpack.c.l.b16 %v1410
        %v1450 = vunpack.c.l.b16 %v1411
        %v1451 = vunpack.c.l.b16 %v1412
        %v1452 = vunpack.c.l.b16 %v1413
        %v1453 = vunpack.c.l.b16 %v1414
        %v1454 = vunpack.c.l.b16 %v1415
        %v1455 = vunpack.c.l.b16 %v1416
        %v1456 = vunpack.c.l.b16 %v1417
        %v1457 = vunpack.c.l.b16 %v1418
        %v1458 = vunpack.c.l.b16 %v1419
        %v1459 = vunpack.c.l.b16 %v1420
        %v1460 = vunpack.c.l.b16 %v1421
        %v1461 = vpack.c.b16 %v1446, %v1445
        %v1462 = vpack.c.b16 %v1448, %v1447
        %v1463 = vpack.c.b16 %v1450, %v1449
        %v1464 = vpack.c.b16 %v1452, %v1451
        %v1465 = vpack.c.b16 %v1454, %v1453
        %v1466 = vpack.c.b16 %v1456, %v1455
        %v1467 = vpack.c.b16 %v1458, %v1457
        %v1468 = vpack.c.b16 %v1460, %v1459
        %1477 = vmatprep.subr.bf16.mxu0 0
        %1478 = vmatpush1.bf16.msra.mxu0 %v1461
        %1479 = vmatprep.subr.bf16.mxu0 0
        %1480 = vmatpush1.bf16.msra.mxu0 %v1462
        %1481 = vmatprep.subr.bf16.mxu0 0
        %1482 = vmatpush1.bf16.msra.mxu0 %v1463
        %1483 = vmatprep.subr.bf16.mxu0 0
        %1484 = vmatpush1.bf16.msra.mxu0 %v1464
        %1485 = vmatprep.subr.bf16.mxu0 0
        %1486 = vmatpush1.bf16.msra.mxu0 %v1465
        %1487 = vmatprep.subr.bf16.mxu0 0
        %1488 = vmatpush1.bf16.msra.mxu0 %v1466
        %1489 = vmatprep.subr.bf16.mxu0 0
        %1490 = vmatpush1.bf16.msra.mxu0 %v1467
        %1491 = vmatprep.subr.bf16.mxu0 0
        %1492 = vmatpush1.bf16.msra.mxu0 %v1468
        %1493 = vmatprep.subr.bf16.mxu0 0
        %1494 = vmatpush1.bf16.msra.mxu0 0
        %1495 = vmatprep.subr.bf16.mxu0 0
        %1496 = vmatpush1.bf16.msra.mxu0 0
        %1497 = vmatprep.subr.bf16.mxu0 0
        %1498 = vmatpush1.bf16.msra.mxu0 0
        %1499 = vmatprep.subr.bf16.mxu0 0
        %1500 = vmatpush1.bf16.msra.mxu0 0
        %1501 = vmatprep.subr.bf16.mxu0 0
        %1502 = vmatpush1.bf16.msra.mxu0 0
        %1503 = vmatprep.subr.bf16.mxu0 0
        %1504 = vmatpush1.bf16.msra.mxu0 0
        %1505 = vmatprep.subr.bf16.mxu0 0
        %1506 = vmatpush1.bf16.msra.mxu0 0
        %1507 = vmatprep.subr.bf16.mxu0 0
        %1508 = vmatpush1.bf16.msra.mxu0 0
        %1509 = vmatprep.mubr.bf16.mxu0 0
        %1510 = vmatmul.mubr.bf16.gmra.mrb[0].mxu0 %v1398
        %v1511 = vpop.f32.mrb[0].mxu0
        %v1512 = vadd.f32 %v1427, %v1511
        %v1513 = vpop.f32.mrb[0].mxu0
        %v1514 = vpop.f32.mrb[0].mxu0
        %v1515 = vadd.f32 %v1427, %v1514
        %v1516 = vpop.f32.mrb[0].mxu0
        %1517 = vmatprep.mubr.bf16.mxu0 0
        %1518 = vmatmul.mubr.bf16.gmra.mrb[0].mxu0 %v1399
        %v1519 = vpop.f32.mrb[0].mxu0
        %v1520 = vadd.f32 %v1427, %v1519
        %v1521 = vpop.f32.mrb[0].mxu0
        %v1522 = vpop.f32.mrb[0].mxu0
        %v1523 = vadd.f32 %v1427, %v1522
        %v1524 = vpop.f32.mrb[0].mxu0
        %1525 = vmatprep.mubr.bf16.mxu0 0
        %1526 = vmatmul.mubr.bf16.gmra.mrb[0].mxu0 %v1400
        %v1527 = vpop.f32.mrb[0].mxu0
        %v1528 = vadd.f32 %v1427, %v1527
        %v1529 = vpop.f32.mrb[0].mxu0
        %v1530 = vpop.f32.mrb[0].mxu0
        %v1531 = vadd.f32 %v1427, %v1530
        %v1532 = vpop.f32.mrb[0].mxu0
        %1533 = vmatprep.mubr.bf16.mxu0 0
        %1534 = vmatmul.mubr.bf16.gmra.mrb[0].mxu0 %v1401
        %v1535 = vpop.f32.mrb[0].mxu0
        %v1536 = vadd.f32 %v1427, %v1535
        %v1537 = vpop.f32.mrb[0].mxu0
        %v1538 = vpop.f32.mrb[0].mxu0
        %v1539 = vadd.f32 %v1427, %v1538
        %v1540 = vpop.f32.mrb[0].mxu0
        %1541 = vmatprep.mubr.bf16.mxu0 0
        %1542 = vmatmul.mubr.bf16.gmra.mrb[0].mxu0 %v1402
        %v1543 = vpop.f32.mrb[0].mxu0
        %v1544 = vadd.f32 %v1427, %v1543
        %v1545 = vpop.f32.mrb[0].mxu0
        %v1546 = vpop.f32.mrb[0].mxu0
        %v1547 = vadd.f32 %v1427, %v1546
        %v1548 = vpop.f32.mrb[0].mxu0
        %1549 = vmatprep.mubr.bf16.mxu0 0
        %1550 = vmatmul.mubr.bf16.gmra.mrb[0].mxu0 %v1403
        %v1551 = vpop.f32.mrb[0].mxu0
        %v1552 = vadd.f32 %v1427, %v1551
        %v1553 = vpop.f32.mrb[0].mxu0
        %v1554 = vpop.f32.mrb[0].mxu0
        %v1555 = vadd.f32 %v1427, %v1554
        %v1556 = vpop.f32.mrb[0].mxu0
        %1557 = vmatprep.mubr.bf16.mxu0 0
        %1558 = vmatmul.mubr.bf16.gmra.mrb[0].mxu0 %v1404
        %v1559 = vpop.f32.mrb[0].mxu0
        %v1560 = vadd.f32 %v1427, %v1559
        %v1561 = vpop.f32.mrb[0].mxu0
        %v1562 = vpop.f32.mrb[0].mxu0
        %v1563 = vadd.f32 %v1427, %v1562
        %v1564 = vpop.f32.mrb[0].mxu0
        %1565 = vmatprep.mubr.bf16.mxu0 0
        %1566 = vmatmul.mubr.bf16.gmra.mrb[0].mxu0 %v1405
        %v1567 = vpop.f32.mrb[0].mxu0
        %v1568 = vadd.f32 %v1427, %v1567
        %v1569 = vpop.f32.mrb[0].mxu0
        %v1570 = vpop.f32.mrb[0].mxu0
        %v1571 = vadd.f32 %v1427, %v1570
        %v1572 = vpop.f32.mrb[0].mxu0
        %1573 = vdwg.mxu0
        %1574 = vst [vmem:[%s410] sm:$0xff] %v1512
        %1575 = vst [vmem:[%s410 + $0x8] sm:$0xff] %v1515
        %1576 = vst [vmem:[%s410 + $0x10] sm:$0xff] %v1520
        %1577 = vst [vmem:[%s410 + $0x18] sm:$0xff] %v1523
        %1578 = vst [vmem:[%s410 + $0x20] sm:$0xff] %v1528
        %1579 = vst [vmem:[%s410 + $0x28] sm:$0xff] %v1531
        %1580 = vst [vmem:[%s410 + $0x30] sm:$0xff] %v1536
        %1581 = vst [vmem:[%s410 + $0x38] sm:$0xff] %v1539
        %1582 = vst [vmem:[%s410 + $0x40] sm:$0xff] %v1544
        %1583 = vst [vmem:[%s410 + $0x48] sm:$0xff] %v1547
        %1584 = vst [vmem:[%s410 + $0x50] sm:$0xff] %v1552
        %1585 = vst [vmem:[%s410 + $0x58] sm:$0xff] %v1555
        %1586 = vst [vmem:[%s410 + $0x60] sm:$0xff] %v1560
        %1587 = vst [vmem:[%s410 + $0x68] sm:$0xff] %v1563
        %1588 = vst [vmem:[%s410 + $0x70] sm:$0xff] %v1568
        %1589 = vst [vmem:[%s410 + $0x78] sm:$0xff] %v1571
        %s1590 = sand.u32 %s209, 1
        %s1591 = scalar_lea.sflag [#allocation4], %s1590
        %s1592 = sand.u32 %s209, 1
        %s1593 = smul.addr %s1592, 128
        %s1594 = scalar_lea.vmem [#allocation14], %s1593
        // Predicated region
        $region81: #{tpu_custom_call.1} parent=51 // pred_check
          %p1595 = pneg %p219
        $region82: #{tpu_custom_call.1} parent=51 // pred_check_branch
          %1597 = sbr.rel (%p1595) target = $region84
        $region83: #{tpu_custom_call.1} parent=51 // pred_region
          %s1598 = smul.u32 16, %s28
          %s1600 = ssub.s32 2048, 2048
          %1601 = vsyncadd %s1591, %s1600
          %s1602 = smul.addr %s1598, 128
          %s1603 = scalar_lea.hbm %s8, %s1602
          %s1604 = sshll.u32 %s1594, 4
          %s1605 = int_to_ptr.vmem [resolvable:$true] %s1604
          %1610 = dma.vmem_to_hbm [thread:$0]  %s1605, 2048, %s1603, %s1591, 128, 128, 8
        $region84: #{tpu_custom_call.1} parent=51 // pred_fallthru
          _
      $region52: #{tpu_custom_call.1} parent=5 // pred_fallthru
        _
      %p1611 = scmp.le.s32.totalorder 2, %s23
      // Predicated region
      $region85: #{tpu_custom_call.1} parent=5 // pred_check
        %p1612 = pneg %p1611
      $region86: #{tpu_custom_call.1} parent=5 // pred_check_branch
        %1614 = sbr.rel (%p1612) target = $region88
      $region87: #{tpu_custom_call.1} parent=5 // pred_region
        %s1615 = ssub.s32 %s23, 2
        // Predicated region
        $region89: #{tpu_custom_call.1} parent=87 // pred_check
          %p1616 = pneg %p225
        $region90: #{tpu_custom_call.1} parent=87 // pred_check_branch
          %1618 = sbr.rel (%p1616) target = $region92
        $region91: #{tpu_custom_call.1} parent=87 // pred_region
          %s1619 = sand.u32 %s210, 1
          %s1620 = scalar_lea.sflag [#allocation4], %s1619
          %s1621 = sand.u32 %s210, 1
          %s1622 = smul.addr %s1621, 128
          %s1623 = scalar_lea.vmem [#allocation14], %s1622
          %1624 = dma.done %s1620, 2048
        $region92: #{tpu_custom_call.1} parent=87 // pred_fallthru
          _
      $region88: #{tpu_custom_call.1} parent=5 // pred_fallthru
        _
    $region6: #{tpu_custom_call.1} parent=1 // loop_footer
      %s27 = sadd.s32 1, %s23
    $region7: #{tpu_custom_call.1} parent=1 // loop_footer_branch
      %22 = sbr.rel target = $region3
    $region8: #{tpu_custom_call.1} parent=1 // loop_exit
      _
    %1625 = vsyncpa [#allocation3], 1
    %s1626 = scalar_lea.sflag [#allocation3], 1
    %1627 = vsyncpa %s1626, 1
    %1628 = vsyncpa [#allocation6], 1
    %1629 = vsyncpa [#allocation9], 1
    %1630 = vsyncpa [#allocation12], 1
    %1631 = vsyncpa [#allocation4], 1
    %s1632 = scalar_lea.sflag [#allocation4], 1
    %1633 = vsyncpa %s1632, 1

</llo_original>
